<compile_context>
chip_gen: v5e
topology: v5e:2x2
jax: 0.10.0
libtpu: 0.0.40
codegen_flags: <defaults>
</compile_context>

<pallas_src>
import jax
import jax.numpy as jnp
from jax.experimental import pallas as pl
from jax.experimental.pallas import tpu as pltpu

IMG_SHAPE = (1, 28, 28)
IN_DIM = IMG_SHAPE[0] * IMG_SHAPE[1] * IMG_SHAPE[2]   # 784
K_PAD = 896                                           # 7 * 128 lane-aligned K
H1 = 512
H2 = 256
OUT_DIM = 1
NEG_SLOPE = 0.2
TB_MAX = 256                                          # batch tile (rows)


def _round_up(n, m):
    return ((n + m - 1) // m) * m


def _leaky_relu(x, slope):
    return jnp.where(x > 0, x, slope * x)


def discriminator_kernel(x_ref, w1_ref, b1_ref, w2_ref, b2_ref,
                         w3_ref, b3_ref, o_ref):
    """One batch tile of the fused 3-layer MLP.

    x_ref: (TB, 896) bf16   w1_ref: (896, 512) bf16   b1_ref: (1, 512) f32
    w2_ref: (512, 256) bf16 b2_ref: (1, 256) f32
    w3_ref: (1, 256)  f32   b3_ref: (1, 1)   f32      o_ref: (TB, 1) f32
    """
    x = x_ref[...]                                                    # (TB, 896)

    h1 = jnp.dot(x, w1_ref[...], preferred_element_type=jnp.float32)
    h1 = _leaky_relu(h1 + b1_ref[...], NEG_SLOPE)                     # (TB, 512)

    h2 = jnp.dot(h1.astype(jnp.bfloat16), w2_ref[...],
                 preferred_element_type=jnp.float32)
    h2 = _leaky_relu(h2 + b2_ref[...], NEG_SLOPE)                     # (TB, 256)

    # N=1 output layer: VPU broadcast-multiply + XLU lane reduction instead of
    # pushing a 1-column matmul through the MXU.
    h3 = jnp.sum(h2 * w3_ref[...], axis=-1, keepdims=True)            # (TB, 1)
    o_ref[...] = h3 + b3_ref[...]


@jax.jit
def discriminator_forward(x, params):
    """x: (B, C, H, W) float32 -> (B, 1) float32."""
    w1, b1, w2, b2, w3, b3 = params
    B = x.shape[0]
    x_flat = x.reshape(B, -1).astype(jnp.float32)                     # (B, 784)

    # Choose batch tile and pad the batch so the grid divides evenly.
    TB = min(TB_MAX, _round_up(max(B, 1), 8))
    B_pad = _round_up(B, TB)
    num_tiles = B_pad // TB

    # Lane-align layer-1 K (784 -> 896) and cast streaming operands to bf16.
    x_p = jnp.zeros((B_pad, K_PAD), jnp.bfloat16)
    x_p = x_p.at[:B, :IN_DIM].set(x_flat.astype(jnp.bfloat16))
    w1_p = jnp.zeros((K_PAD, H1), jnp.bfloat16)
    w1_p = w1_p.at[:IN_DIM, :].set(w1.astype(jnp.bfloat16))
    w2_b = w2.astype(jnp.bfloat16)
    b1_f = b1.astype(jnp.float32)
    b2_f = b2.astype(jnp.float32)
    w3_r = w3.reshape(1, H2).astype(jnp.float32)                      # VPU path
    b3_r = b3.reshape(1, OUT_DIM).astype(jnp.float32)

    cost = pl.CostEstimate(
        flops=2 * B_pad * (K_PAD * H1 + H1 * H2 + H2 * OUT_DIM),
        transcendentals=0,
        bytes_accessed=(x_p.size * 2 + w1_p.size * 2 + w2_b.size * 2
                        + (b1_f.size + b2_f.size + w3_r.size + b3_r.size) * 4
                        + B_pad * OUT_DIM * 4),
    )

    out = pl.pallas_call(
        discriminator_kernel,
        out_shape=jax.ShapeDtypeStruct((B_pad, OUT_DIM), jnp.float32),
        grid_spec=pltpu.PrefetchScalarGridSpec(
            num_scalar_prefetch=0,
            grid=(num_tiles,),
            in_specs=[
                # streamed activation tile
                pl.BlockSpec((TB, K_PAD), lambda i: (i, 0)),
                # weights / biases: constant index map -> resident in VMEM
                pl.BlockSpec((K_PAD, H1), lambda i: (0, 0)),
                pl.BlockSpec((1, H1), lambda i: (0, 0)),
                pl.BlockSpec((H1, H2), lambda i: (0, 0)),
                pl.BlockSpec((1, H2), lambda i: (0, 0)),
                pl.BlockSpec((1, H2), lambda i: (0, 0)),
                pl.BlockSpec((1, OUT_DIM), lambda i: (0, 0)),
            ],
            out_specs=pl.BlockSpec((TB, OUT_DIM), lambda i: (i, 0)),
        ),
        compiler_params=pltpu.CompilerParams(
            dimension_semantics=("parallel",),        # megacore on v7x
            vmem_limit_bytes=32 * 1024 * 1024,
        ),
        cost_estimate=cost,
    )(x_p, w1_p, b1_f, w2_b, b2_f, w3_r, b3_r)

    return out[:B]


def init_params(key):
    """Deterministic init mimicking PyTorch nn.Linear default (U[-1/sqrt(fan_in), +])."""
    def linear_init(k, fan_in, fan_out):
        kw, kb = jax.random.split(k)
        bound = 1.0 / jnp.sqrt(fan_in)
        # stored as (in, out) so the kernel computes x @ W + b (== x @ W_pt.T + b)
        w = jax.random.uniform(kw, (fan_in, fan_out), jnp.float32, -bound, bound)
        b = jax.random.uniform(kb, (1, fan_out), jnp.float32, -bound, bound)
        return w, b

    k1, k2, k3 = jax.random.split(key, 3)
    w1, b1 = linear_init(k1, IN_DIM, H1)
    w2, b2 = linear_init(k2, H1, H2)
    w3, b3 = linear_init(k3, H2, OUT_DIM)
    return (w1, b1, w2, b2, w3, b3)


def _reference_forward(x, params):
    """Plain-JAX f32 reference for correctness checking."""
    w1, b1, w2, b2, w3, b3 = params
    h = x.reshape(x.shape[0], -1)
    h = jax.nn.leaky_relu(h @ w1 + b1, NEG_SLOPE)
    h = jax.nn.leaky_relu(h @ w2 + b2, NEG_SLOPE)
    return h @ w3 + b3


if __name__ == "__main__":
    key = jax.random.PRNGKey(0)
    kp, kx = jax.random.split(key)

    params = init_params(kp)
    # small batch, image shape matches module default (1, 28, 28)
    x = jax.random.normal(kx, (2, *IMG_SHAPE), dtype=jnp.float32)

    out = discriminator_forward(x, params)
    out = jax.block_until_ready(out)

    ref = _reference_forward(x, params)
    assert out.shape == (2, 1), out.shape
    # bf16 matmul inputs with f32 accumulation -> small deviation vs pure-f32 ref
    assert jnp.allclose(out, ref, atol=3e-2, rtol=3e-2), (out, ref)

    print("KERNEL_OK")
</pallas_src>

<mosaic_0001>
module attributes {stable_mosaic.version = 11 : i64} {
  func.func @discriminator_kernel(%arg0: i32, %arg1: memref<8x896xbf16, #tpu.memory_space<vmem>>, %arg2: memref<896x512xbf16, #tpu.memory_space<vmem>>, %arg3: memref<1x512xf32, #tpu.memory_space<vmem>>, %arg4: memref<512x256xbf16, #tpu.memory_space<vmem>>, %arg5: memref<1x256xf32, #tpu.memory_space<vmem>>, %arg6: memref<1x256xf32, #tpu.memory_space<vmem>>, %arg7: memref<1x1xf32, #tpu.memory_space<vmem>>, %arg8: memref<8x1xf32, #tpu.memory_space<vmem>>) attributes {dimension_semantics = [#tpu.dimension_semantics<parallel>], iteration_bounds = array<i64: 1>, scalar_prefetch = 0 : i64, scratch_operands = 0 : i64, tpu.core_type = #tpu.core_type<tc>, window_params = [{transform_indices = @transform_0, window_bounds = array<i64: 8, 896>}, {pipeline_mode = #tpu.pipeline_mode<synchronous>, transform_indices = @transform_1, window_bounds = array<i64: 896, 512>}, {pipeline_mode = #tpu.pipeline_mode<synchronous>, transform_indices = @transform_2, window_bounds = array<i64: 1, 512>}, {pipeline_mode = #tpu.pipeline_mode<synchronous>, transform_indices = @transform_3, window_bounds = array<i64: 512, 256>}, {pipeline_mode = #tpu.pipeline_mode<synchronous>, transform_indices = @transform_4, window_bounds = array<i64: 1, 256>}, {pipeline_mode = #tpu.pipeline_mode<synchronous>, transform_indices = @transform_5, window_bounds = array<i64: 1, 256>}, {pipeline_mode = #tpu.pipeline_mode<synchronous>, transform_indices = @transform_6, window_bounds = array<i64: 1, 1>}, {transform_indices = @transform_7, window_bounds = array<i64: 8, 1>}]} {
    %c0 = arith.constant 0 : index
    %c0_0 = arith.constant 0 : index
    %0 = vector.load %arg1[%c0, %c0_0] : memref<8x896xbf16, #tpu.memory_space<vmem>>, vector<8x896xbf16>
    %c0_1 = arith.constant 0 : index
    %c0_2 = arith.constant 0 : index
    %1 = vector.load %arg2[%c0_1, %c0_2] : memref<896x512xbf16, #tpu.memory_space<vmem>>, vector<896x512xbf16>
    %cst = arith.constant dense<0.000000e+00> : vector<8x512xf32>
    %2 = tpu.matmul %0, %1, %cst {dimension_numbers = #tpu.dot_dimension_numbers<[1], [0], [0], [1], [0, 0, 1, 1], [], []>} : vector<8x896xbf16>, vector<896x512xbf16>, vector<8x512xf32> -> vector<8x512xf32>
    %c0_3 = arith.constant 0 : index
    %c0_4 = arith.constant 0 : index
    %3 = vector.load %arg3[%c0_3, %c0_4] : memref<1x512xf32, #tpu.memory_space<vmem>>, vector<1x512xf32>
    %4 = vector.broadcast %3 : vector<1x512xf32> to vector<8x512xf32>
    %5 = arith.addf %2, %4 : vector<8x512xf32>
    %cst_5 = arith.constant 0.000000e+00 : f32
    %6 = vector.broadcast %cst_5 : f32 to vector<8x512xf32>
    %7 = arith.cmpf ogt, %5, %6 : vector<8x512xf32>
    %cst_6 = arith.constant 2.000000e-01 : f32
    %8 = vector.broadcast %cst_6 : f32 to vector<8x512xf32>
    %9 = arith.mulf %8, %5 : vector<8x512xf32>
    %10 = arith.select %7, %5, %9 : vector<8x512xi1>, vector<8x512xf32>
    %11 = arith.truncf %10 : vector<8x512xf32> to vector<8x512xbf16>
    %c0_7 = arith.constant 0 : index
    %c0_8 = arith.constant 0 : index
    %12 = vector.load %arg4[%c0_7, %c0_8] : memref<512x256xbf16, #tpu.memory_space<vmem>>, vector<512x256xbf16>
    %cst_9 = arith.constant dense<0.000000e+00> : vector<8x256xf32>
    %13 = tpu.matmul %11, %12, %cst_9 {dimension_numbers = #tpu.dot_dimension_numbers<[1], [0], [0], [1], [0, 0, 1, 1], [], []>} : vector<8x512xbf16>, vector<512x256xbf16>, vector<8x256xf32> -> vector<8x256xf32>
    %c0_10 = arith.constant 0 : index
    %c0_11 = arith.constant 0 : index
    %14 = vector.load %arg5[%c0_10, %c0_11] : memref<1x256xf32, #tpu.memory_space<vmem>>, vector<1x256xf32>
    %15 = vector.broadcast %14 : vector<1x256xf32> to vector<8x256xf32>
    %16 = arith.addf %13, %15 : vector<8x256xf32>
    %cst_12 = arith.constant 0.000000e+00 : f32
    %17 = vector.broadcast %cst_12 : f32 to vector<8x256xf32>
    %18 = arith.cmpf ogt, %16, %17 : vector<8x256xf32>
    %cst_13 = arith.constant 2.000000e-01 : f32
    %19 = vector.broadcast %cst_13 : f32 to vector<8x256xf32>
    %20 = arith.mulf %19, %16 : vector<8x256xf32>
    %21 = arith.select %18, %16, %20 : vector<8x256xi1>, vector<8x256xf32>
    %c0_14 = arith.constant 0 : index
    %c0_15 = arith.constant 0 : index
    %22 = vector.load %arg6[%c0_14, %c0_15] : memref<1x256xf32, #tpu.memory_space<vmem>>, vector<1x256xf32>
    %23 = vector.broadcast %22 : vector<1x256xf32> to vector<8x256xf32>
    %24 = arith.mulf %21, %23 : vector<8x256xf32>
    %cst_16 = arith.constant dense<0.000000e+00> : vector<8xf32>
    %25 = vector.multi_reduction <add>, %24, %cst_16 [1] : vector<8x256xf32> to vector<8xf32>
    %26 = vector.shape_cast %25 : vector<8xf32> to vector<8x1xf32>
    %c0_17 = arith.constant 0 : index
    %c0_18 = arith.constant 0 : index
    %27 = vector.load %arg7[%c0_17, %c0_18] : memref<1x1xf32, #tpu.memory_space<vmem>>, vector<1x1xf32>
    %28 = vector.broadcast %27 : vector<1x1xf32> to vector<8x1xf32>
    %29 = arith.addf %26, %28 : vector<8x1xf32>
    %c0_19 = arith.constant 0 : index
    %c0_20 = arith.constant 0 : index
    %30 = vector.load %arg8[%c0_19, %c0_20] : memref<8x1xf32, #tpu.memory_space<vmem>>, vector<8x1xf32>
    tpu.vector_store %arg8[%c0_19, %c0_20], %29 {strides = array<i32>} : memref<8x1xf32, #tpu.memory_space<vmem>>, vector<8x1xf32>,
    return
  }
  func.func @transform_0(%arg0: i32) -> (i32, i32) {
    %c0_i32 = arith.constant 0 : i32
    %c0_i32_0 = arith.constant 0 : i32
    return %arg0, %c0_i32 : i32, i32
  }
  func.func @transform_1(%arg0: i32) -> (i32, i32) {
    %c0_i32 = arith.constant 0 : i32
    %c0_i32_0 = arith.constant 0 : i32
    %c0_i32_1 = arith.constant 0 : i32
    return %c0_i32, %c0_i32_0 : i32, i32
  }
  func.func @transform_2(%arg0: i32) -> (i32, i32) {
    %c0_i32 = arith.constant 0 : i32
    %c0_i32_0 = arith.constant 0 : i32
    %c0_i32_1 = arith.constant 0 : i32
    return %c0_i32, %c0_i32_0 : i32, i32
  }
  func.func @transform_3(%arg0: i32) -> (i32, i32) {
    %c0_i32 = arith.constant 0 : i32
    %c0_i32_0 = arith.constant 0 : i32
    %c0_i32_1 = arith.constant 0 : i32
    return %c0_i32, %c0_i32_0 : i32, i32
  }
  func.func @transform_4(%arg0: i32) -> (i32, i32) {
    %c0_i32 = arith.constant 0 : i32
    %c0_i32_0 = arith.constant 0 : i32
    %c0_i32_1 = arith.constant 0 : i32
    return %c0_i32, %c0_i32_0 : i32, i32
  }
  func.func @transform_5(%arg0: i32) -> (i32, i32) {
    %c0_i32 = arith.constant 0 : i32
    %c0_i32_0 = arith.constant 0 : i32
    %c0_i32_1 = arith.constant 0 : i32
    return %c0_i32, %c0_i32_0 : i32, i32
  }
  func.func @transform_6(%arg0: i32) -> (i32, i32) {
    %c0_i32 = arith.constant 0 : i32
    %c0_i32_0 = arith.constant 0 : i32
    %c0_i32_1 = arith.constant 0 : i32
    return %c0_i32, %c0_i32_0 : i32, i32
  }
  func.func @transform_7(%arg0: i32) -> (i32, i32) {
    %c0_i32 = arith.constant 0 : i32
    %c0_i32_0 = arith.constant 0 : i32
    return %arg0, %c0_i32 : i32, i32
  }
}

</mosaic_0001>

<llo_original>
// kernel: discriminator_forward.1
$region0: #{discriminator_forward.1}
  #allocation0 [shape = 'u32[]', space=smem, size = 0x4, offset = 0x4, fixed_abs, tag = 'smem constant byte address 0x4 - core index']
  #allocation1 [shape = 'u32[72,128]{1,0:T(1,128)}', space=vmem, size = 0x9000, scoped, tag = 'internal scratch']
  #allocation2 [shape = 'f32[1,1]{1,0:T(1,128)S(1)}', space=vmem, size = 0x200, scoped, tag = 'scoped memory for discriminator_forward.1']
  %s0 = inlined_call_operand.vmem [shape: bf16[8,896], index: 0, kind: input, shape index: {}]
  %s1 = inlined_call_operand.vmem [shape: bf16[896,512], index: 1, kind: input, shape index: {}]
  %s2 = inlined_call_operand.vmem [shape: f32[1,512], index: 2, kind: input, shape index: {}]
  %s3 = inlined_call_operand.vmem [shape: bf16[512,256], index: 3, kind: input, shape index: {}]
  %s4 = inlined_call_operand.vmem [shape: f32[1,256], index: 4, kind: input, shape index: {}]
  %s5 = inlined_call_operand.vmem [shape: f32[1,256], index: 5, kind: input, shape index: {}]
  %s6 = inlined_call_operand.<no memory space> [shape: f32[1,1], index: 6, kind: input, shape index: {}]
  %s7 = inlined_call_operand.vmem [shape: f32[8,1], index: 7, kind: output, shape index: {}]
  %s8 = sld [smem:[#allocation0]]
  $region38: #{discriminator_forward.1} parent=0
    _
  %s10 = ssub.s32 1, %s8
  %s11 = scalar_select 0, %s10, %s8
  %v12 = vstv %s6
  %13 = vst [vmem:[#allocation2] sm:$0x1] %v12
  // Predicated region
  $region2: #{discriminator_forward.1} parent=0 // pred_check
    _
  $region3: #{discriminator_forward.1} parent=0 // pred_check_branch
    %15 = sbr.rel (0) target = $region5
  $region4: #{discriminator_forward.1} parent=0 // pred_region
    _
  $region5: #{discriminator_forward.1} parent=0 // pred_fallthru
    _
  // Predicated region
  $region6: #{discriminator_forward.1} parent=0 // pred_check
    _
  $region7: #{discriminator_forward.1} parent=0 // pred_check_branch
    %17 = sbr.rel (0) target = $region9
  $region8: #{discriminator_forward.1} parent=0 // pred_region
    _
  $region9: #{discriminator_forward.1} parent=0 // pred_fallthru
    _
  // Predicated region
  $region10: #{discriminator_forward.1} parent=0 // pred_check
    _
  $region11: #{discriminator_forward.1} parent=0 // pred_check_branch
    %19 = sbr.rel (0) target = $region13
  $region12: #{discriminator_forward.1} parent=0 // pred_region
    _
  $region13: #{discriminator_forward.1} parent=0 // pred_fallthru
    _
  // Predicated region
  $region14: #{discriminator_forward.1} parent=0 // pred_check
    _
  $region15: #{discriminator_forward.1} parent=0 // pred_check_branch
    %21 = sbr.rel (0) target = $region17
  $region16: #{discriminator_forward.1} parent=0 // pred_region
    _
  $region17: #{discriminator_forward.1} parent=0 // pred_fallthru
    _
  // Predicated region
  $region18: #{discriminator_forward.1} parent=0 // pred_check
    _
  $region19: #{discriminator_forward.1} parent=0 // pred_check_branch
    %23 = sbr.rel (0) target = $region21
  $region20: #{discriminator_forward.1} parent=0 // pred_region
    _
  $region21: #{discriminator_forward.1} parent=0 // pred_fallthru
    _
  // Predicated region
  $region22: #{discriminator_forward.1} parent=0 // pred_check
    _
  $region23: #{discriminator_forward.1} parent=0 // pred_check_branch
    %25 = sbr.rel (0) target = $region25
  $region24: #{discriminator_forward.1} parent=0 // pred_region
    _
  $region25: #{discriminator_forward.1} parent=0 // pred_fallthru
    _
  // Predicated region
  $region26: #{discriminator_forward.1} parent=0 // pred_check
    _
  $region27: #{discriminator_forward.1} parent=0 // pred_check_branch
    %27 = sbr.rel (0) target = $region29
  $region28: #{discriminator_forward.1} parent=0 // pred_region
    _
  $region29: #{discriminator_forward.1} parent=0 // pred_fallthru
    _
  %v28 = vld [vmem:[%s0] sm:$0xff]
  %v29 = vld [vmem:[%s0 + $0x8] sm:$0xff]
  %v30 = vld [vmem:[%s0 + $0x10] sm:$0xff]
  %v31 = vld [vmem:[%s0 + $0x18] sm:$0xf]
  %v32 = vld [vmem:[%s1] sm:$0xff]
  %v33 = vld [vmem:[%s1 + $0x8] sm:$0xff]
  %v34 = vld [vmem:[%s1 + $0x10] sm:$0xff]
  %v35 = vld [vmem:[%s1 + $0x18] sm:$0xff]
  %v36 = vld [vmem:[%s1 + $0x20] sm:$0xff]
  %v37 = vld [vmem:[%s1 + $0x28] sm:$0xff]
  %v38 = vld [vmem:[%s1 + $0x30] sm:$0xff]
  %v39 = vld [vmem:[%s1 + $0x38] sm:$0xff]
  %v40 = vld [vmem:[%s1 + $0x40] sm:$0xff]
  %v41 = vld [vmem:[%s1 + $0x48] sm:$0xff]
  %v42 = vld [vmem:[%s1 + $0x50] sm:$0xff]
  %v43 = vld [vmem:[%s1 + $0x58] sm:$0xff]
  %v44 = vld [vmem:[%s1 + $0x60] sm:$0xff]
  %v45 = vld [vmem:[%s1 + $0x68] sm:$0xff]
  %v46 = vld [vmem:[%s1 + $0x70] sm:$0xff]
  %v47 = vld [vmem:[%s1 + $0x78] sm:$0xff]
  %v48 = vld [vmem:[%s1 + $0x80] sm:$0xff]
  %v49 = vld [vmem:[%s1 + $0x88] sm:$0xff]
  %v50 = vld [vmem:[%s1 + $0x90] sm:$0xff]
  %v51 = vld [vmem:[%s1 + $0x98] sm:$0xff]
  %v52 = vld [vmem:[%s1 + $0xa0] sm:$0xff]
  %v53 = vld [vmem:[%s1 + $0xa8] sm:$0xff]
  %v54 = vld [vmem:[%s1 + $0xb0] sm:$0xff]
  %v55 = vld [vmem:[%s1 + $0xb8] sm:$0xff]
  %v56 = vld [vmem:[%s1 + $0xc0] sm:$0xff]
  %v57 = vld [vmem:[%s1 + $0xc8] sm:$0xff]
  %v58 = vld [vmem:[%s1 + $0xd0] sm:$0xff]
  %v59 = vld [vmem:[%s1 + $0xd8] sm:$0xff]
  %v60 = vld [vmem:[%s1 + $0xe0] sm:$0xff]
  %v61 = vld [vmem:[%s1 + $0xe8] sm:$0xff]
  %v62 = vld [vmem:[%s1 + $0xf0] sm:$0xff]
  %v63 = vld [vmem:[%s1 + $0xf8] sm:$0xff]
  %v64 = vld [vmem:[%s1 + $0x100] sm:$0xff]
  %v65 = vld [vmem:[%s1 + $0x108] sm:$0xff]
  %v66 = vld [vmem:[%s1 + $0x110] sm:$0xff]
  %v67 = vld [vmem:[%s1 + $0x118] sm:$0xff]
  %v68 = vld [vmem:[%s1 + $0x120] sm:$0xff]
  %v69 = vld [vmem:[%s1 + $0x128] sm:$0xff]
  %v70 = vld [vmem:[%s1 + $0x130] sm:$0xff]
  %v71 = vld [vmem:[%s1 + $0x138] sm:$0xff]
  %v72 = vld [vmem:[%s1 + $0x140] sm:$0xff]
  %v73 = vld [vmem:[%s1 + $0x148] sm:$0xff]
  %v74 = vld [vmem:[%s1 + $0x150] sm:$0xff]
  %v75 = vld [vmem:[%s1 + $0x158] sm:$0xff]
  %v76 = vld [vmem:[%s1 + $0x160] sm:$0xff]
  %v77 = vld [vmem:[%s1 + $0x168] sm:$0xff]
  %v78 = vld [vmem:[%s1 + $0x170] sm:$0xff]
  %v79 = vld [vmem:[%s1 + $0x178] sm:$0xff]
  %v80 = vld [vmem:[%s1 + $0x180] sm:$0xff]
  %v81 = vld [vmem:[%s1 + $0x188] sm:$0xff]
  %v82 = vld [vmem:[%s1 + $0x190] sm:$0xff]
  %v83 = vld [vmem:[%s1 + $0x198] sm:$0xff]
  %v84 = vld [vmem:[%s1 + $0x1a0] sm:$0xff]
  %v85 = vld [vmem:[%s1 + $0x1a8] sm:$0xff]
  %v86 = vld [vmem:[%s1 + $0x1b0] sm:$0xff]
  %v87 = vld [vmem:[%s1 + $0x1b8] sm:$0xff]
  %v88 = vld [vmem:[%s1 + $0x1c0] sm:$0xff]
  %v89 = vld [vmem:[%s1 + $0x1c8] sm:$0xff]
  %v90 = vld [vmem:[%s1 + $0x1d0] sm:$0xff]
  %v91 = vld [vmem:[%s1 + $0x1d8] sm:$0xff]
  %v92 = vld [vmem:[%s1 + $0x1e0] sm:$0xff]
  %v93 = vld [vmem:[%s1 + $0x1e8] sm:$0xff]
  %v94 = vld [vmem:[%s1 + $0x1f0] sm:$0xff]
  %v95 = vld [vmem:[%s1 + $0x1f8] sm:$0xff]
  %v96 = vld [vmem:[%s1 + $0x200] sm:$0xff]
  %v97 = vld [vmem:[%s1 + $0x208] sm:$0xff]
  %v98 = vld [vmem:[%s1 + $0x210] sm:$0xff]
  %v99 = vld [vmem:[%s1 + $0x218] sm:$0xff]
  %v100 = vld [vmem:[%s1 + $0x220] sm:$0xff]
  %v101 = vld [vmem:[%s1 + $0x228] sm:$0xff]
  %v102 = vld [vmem:[%s1 + $0x230] sm:$0xff]
  %v103 = vld [vmem:[%s1 + $0x238] sm:$0xff]
  %v104 = vld [vmem:[%s1 + $0x240] sm:$0xff]
  %v105 = vld [vmem:[%s1 + $0x248] sm:$0xff]
  %v106 = vld [vmem:[%s1 + $0x250] sm:$0xff]
  %v107 = vld [vmem:[%s1 + $0x258] sm:$0xff]
  %v108 = vld [vmem:[%s1 + $0x260] sm:$0xff]
  %v109 = vld [vmem:[%s1 + $0x268] sm:$0xff]
  %v110 = vld [vmem:[%s1 + $0x270] sm:$0xff]
  %v111 = vld [vmem:[%s1 + $0x278] sm:$0xff]
  %v112 = vld [vmem:[%s1 + $0x280] sm:$0xff]
  %v113 = vld [vmem:[%s1 + $0x288] sm:$0xff]
  %v114 = vld [vmem:[%s1 + $0x290] sm:$0xff]
  %v115 = vld [vmem:[%s1 + $0x298] sm:$0xff]
  %v116 = vld [vmem:[%s1 + $0x2a0] sm:$0xff]
  %v117 = vld [vmem:[%s1 + $0x2a8] sm:$0xff]
  %v118 = vld [vmem:[%s1 + $0x2b0] sm:$0xff]
  %v119 = vld [vmem:[%s1 + $0x2b8] sm:$0xff]
  %v120 = vld [vmem:[%s1 + $0x2c0] sm:$0xff]
  %v121 = vld [vmem:[%s1 + $0x2c8] sm:$0xff]
  %v122 = vld [vmem:[%s1 + $0x2d0] sm:$0xff]
  %v123 = vld [vmem:[%s1 + $0x2d8] sm:$0xff]
  %v124 = vld [vmem:[%s1 + $0x2e0] sm:$0xff]
  %v125 = vld [vmem:[%s1 + $0x2e8] sm:$0xff]
  %v126 = vld [vmem:[%s1 + $0x2f0] sm:$0xff]
  %v127 = vld [vmem:[%s1 + $0x2f8] sm:$0xff]
  %v128 = vld [vmem:[%s1 + $0x300] sm:$0xff]
  %v129 = vld [vmem:[%s1 + $0x308] sm:$0xff]
  %v130 = vld [vmem:[%s1 + $0x310] sm:$0xff]
  %v131 = vld [vmem:[%s1 + $0x318] sm:$0xff]
  %v132 = vld [vmem:[%s1 + $0x320] sm:$0xff]
  %v133 = vld [vmem:[%s1 + $0x328] sm:$0xff]
  %v134 = vld [vmem:[%s1 + $0x330] sm:$0xff]
  %v135 = vld [vmem:[%s1 + $0x338] sm:$0xff]
  %v136 = vld [vmem:[%s1 + $0x340] sm:$0xff]
  %v137 = vld [vmem:[%s1 + $0x348] sm:$0xff]
  %v138 = vld [vmem:[%s1 + $0x350] sm:$0xff]
  %v139 = vld [vmem:[%s1 + $0x358] sm:$0xff]
  %v140 = vld [vmem:[%s1 + $0x360] sm:$0xff]
  %v141 = vld [vmem:[%s1 + $0x368] sm:$0xff]
  %v142 = vld [vmem:[%s1 + $0x370] sm:$0xff]
  %v143 = vld [vmem:[%s1 + $0x378] sm:$0xff]
  %v144 = vld [vmem:[%s1 + $0x380] sm:$0xff]
  %v145 = vld [vmem:[%s1 + $0x388] sm:$0xff]
  %v146 = vld [vmem:[%s1 + $0x390] sm:$0xff]
  %v147 = vld [vmem:[%s1 + $0x398] sm:$0xff]
  %v148 = vld [vmem:[%s1 + $0x3a0] sm:$0xff]
  %v149 = vld [vmem:[%s1 + $0x3a8] sm:$0xff]
  %v150 = vld [vmem:[%s1 + $0x3b0] sm:$0xff]
  %v151 = vld [vmem:[%s1 + $0x3b8] sm:$0xff]
  %v152 = vld [vmem:[%s1 + $0x3c0] sm:$0xff]
  %v153 = vld [vmem:[%s1 + $0x3c8] sm:$0xff]
  %v154 = vld [vmem:[%s1 + $0x3d0] sm:$0xff]
  %v155 = vld [vmem:[%s1 + $0x3d8] sm:$0xff]
  %v156 = vld [vmem:[%s1 + $0x3e0] sm:$0xff]
  %v157 = vld [vmem:[%s1 + $0x3e8] sm:$0xff]
  %v158 = vld [vmem:[%s1 + $0x3f0] sm:$0xff]
  %v159 = vld [vmem:[%s1 + $0x3f8] sm:$0xff]
  %v160 = vld [vmem:[%s1 + $0x400] sm:$0xff]
  %v161 = vld [vmem:[%s1 + $0x408] sm:$0xff]
  %v162 = vld [vmem:[%s1 + $0x410] sm:$0xff]
  %v163 = vld [vmem:[%s1 + $0x418] sm:$0xff]
  %v164 = vld [vmem:[%s1 + $0x420] sm:$0xff]
  %v165 = vld [vmem:[%s1 + $0x428] sm:$0xff]
  %v166 = vld [vmem:[%s1 + $0x430] sm:$0xff]
  %v167 = vld [vmem:[%s1 + $0x438] sm:$0xff]
  %v168 = vld [vmem:[%s1 + $0x440] sm:$0xff]
  %v169 = vld [vmem:[%s1 + $0x448] sm:$0xff]
  %v170 = vld [vmem:[%s1 + $0x450] sm:$0xff]
  %v171 = vld [vmem:[%s1 + $0x458] sm:$0xff]
  %v172 = vld [vmem:[%s1 + $0x460] sm:$0xff]
  %v173 = vld [vmem:[%s1 + $0x468] sm:$0xff]
  %v174 = vld [vmem:[%s1 + $0x470] sm:$0xff]
  %v175 = vld [vmem:[%s1 + $0x478] sm:$0xff]
  %v176 = vld [vmem:[%s1 + $0x480] sm:$0xff]
  %v177 = vld [vmem:[%s1 + $0x488] sm:$0xff]
  %v178 = vld [vmem:[%s1 + $0x490] sm:$0xff]
  %v179 = vld [vmem:[%s1 + $0x498] sm:$0xff]
  %v180 = vld [vmem:[%s1 + $0x4a0] sm:$0xff]
  %v181 = vld [vmem:[%s1 + $0x4a8] sm:$0xff]
  %v182 = vld [vmem:[%s1 + $0x4b0] sm:$0xff]
  %v183 = vld [vmem:[%s1 + $0x4b8] sm:$0xff]
  %v184 = vld [vmem:[%s1 + $0x4c0] sm:$0xff]
  %v185 = vld [vmem:[%s1 + $0x4c8] sm:$0xff]
  %v186 = vld [vmem:[%s1 + $0x4d0] sm:$0xff]
  %v187 = vld [vmem:[%s1 + $0x4d8] sm:$0xff]
  %v188 = vld [vmem:[%s1 + $0x4e0] sm:$0xff]
  %v189 = vld [vmem:[%s1 + $0x4e8] sm:$0xff]
  %v190 = vld [vmem:[%s1 + $0x4f0] sm:$0xff]
  %v191 = vld [vmem:[%s1 + $0x4f8] sm:$0xff]
  %v192 = vld [vmem:[%s1 + $0x500] sm:$0xff]
  %v193 = vld [vmem:[%s1 + $0x508] sm:$0xff]
  %v194 = vld [vmem:[%s1 + $0x510] sm:$0xff]
  %v195 = vld [vmem:[%s1 + $0x518] sm:$0xff]
  %v196 = vld [vmem:[%s1 + $0x520] sm:$0xff]
  %v197 = vld [vmem:[%s1 + $0x528] sm:$0xff]
  %v198 = vld [vmem:[%s1 + $0x530] sm:$0xff]
  %v199 = vld [vmem:[%s1 + $0x538] sm:$0xff]
  %v200 = vld [vmem:[%s1 + $0x540] sm:$0xff]
  %v201 = vld [vmem:[%s1 + $0x548] sm:$0xff]
  %v202 = vld [vmem:[%s1 + $0x550] sm:$0xff]
  %v203 = vld [vmem:[%s1 + $0x558] sm:$0xff]
  %v204 = vld [vmem:[%s1 + $0x560] sm:$0xff]
  %v205 = vld [vmem:[%s1 + $0x568] sm:$0xff]
  %v206 = vld [vmem:[%s1 + $0x570] sm:$0xff]
  %v207 = vld [vmem:[%s1 + $0x578] sm:$0xff]
  %v208 = vld [vmem:[%s1 + $0x580] sm:$0xff]
  %v209 = vld [vmem:[%s1 + $0x588] sm:$0xff]
  %v210 = vld [vmem:[%s1 + $0x590] sm:$0xff]
  %v211 = vld [vmem:[%s1 + $0x598] sm:$0xff]
  %v212 = vld [vmem:[%s1 + $0x5a0] sm:$0xff]
  %v213 = vld [vmem:[%s1 + $0x5a8] sm:$0xff]
  %v214 = vld [vmem:[%s1 + $0x5b0] sm:$0xff]
  %v215 = vld [vmem:[%s1 + $0x5b8] sm:$0xff]
  %v216 = vld [vmem:[%s1 + $0x5c0] sm:$0xff]
  %v217 = vld [vmem:[%s1 + $0x5c8] sm:$0xff]
  %v218 = vld [vmem:[%s1 + $0x5d0] sm:$0xff]
  %v219 = vld [vmem:[%s1 + $0x5d8] sm:$0xff]
  %v220 = vld [vmem:[%s1 + $0x5e0] sm:$0xff]
  %v221 = vld [vmem:[%s1 + $0x5e8] sm:$0xff]
  %v222 = vld [vmem:[%s1 + $0x5f0] sm:$0xff]
  %v223 = vld [vmem:[%s1 + $0x5f8] sm:$0xff]
  %v224 = vld [vmem:[%s1 + $0x600] sm:$0xff]
  %v225 = vld [vmem:[%s1 + $0x608] sm:$0xff]
  %v226 = vld [vmem:[%s1 + $0x610] sm:$0xff]
  %v227 = vld [vmem:[%s1 + $0x618] sm:$0xff]
  %v228 = vld [vmem:[%s1 + $0x620] sm:$0xff]
  %v229 = vld [vmem:[%s1 + $0x628] sm:$0xff]
  %v230 = vld [vmem:[%s1 + $0x630] sm:$0xff]
  %v231 = vld [vmem:[%s1 + $0x638] sm:$0xff]
  %v232 = vld [vmem:[%s1 + $0x640] sm:$0xff]
  %v233 = vld [vmem:[%s1 + $0x648] sm:$0xff]
  %v234 = vld [vmem:[%s1 + $0x650] sm:$0xff]
  %v235 = vld [vmem:[%s1 + $0x658] sm:$0xff]
  %v236 = vld [vmem:[%s1 + $0x660] sm:$0xff]
  %v237 = vld [vmem:[%s1 + $0x668] sm:$0xff]
  %v238 = vld [vmem:[%s1 + $0x670] sm:$0xff]
  %v239 = vld [vmem:[%s1 + $0x678] sm:$0xff]
  %v240 = vld [vmem:[%s1 + $0x680] sm:$0xff]
  %v241 = vld [vmem:[%s1 + $0x688] sm:$0xff]
  %v242 = vld [vmem:[%s1 + $0x690] sm:$0xff]
  %v243 = vld [vmem:[%s1 + $0x698] sm:$0xff]
  %v244 = vld [vmem:[%s1 + $0x6a0] sm:$0xff]
  %v245 = vld [vmem:[%s1 + $0x6a8] sm:$0xff]
  %v246 = vld [vmem:[%s1 + $0x6b0] sm:$0xff]
  %v247 = vld [vmem:[%s1 + $0x6b8] sm:$0xff]
  %v248 = vld [vmem:[%s1 + $0x6c0] sm:$0xff]
  %v249 = vld [vmem:[%s1 + $0x6c8] sm:$0xff]
  %v250 = vld [vmem:[%s1 + $0x6d0] sm:$0xff]
  %v251 = vld [vmem:[%s1 + $0x6d8] sm:$0xff]
  %v252 = vld [vmem:[%s1 + $0x6e0] sm:$0xff]
  %v253 = vld [vmem:[%s1 + $0x6e8] sm:$0xff]
  %v254 = vld [vmem:[%s1 + $0x6f0] sm:$0xff]
  %v255 = vld [vmem:[%s1 + $0x6f8] sm:$0xff]
  %v256 = vld [vmem:[%s2] sm:$0xf]
  %v258 = vperm.slane %v256, 0
  %v259 = vperm.slane %v256, 1
  %v260 = vperm.slane %v256, 2
  %v261 = vperm.slane %v256, 3
  %v270 = vunpack.c.l.b16 %v28
  %v271 = vunpack.c.h.b16 %v28
  %v272 = vunpack.c.l.b16 %v29
  %v273 = vunpack.c.h.b16 %v29
  %v274 = vunpack.c.l.b16 %v30
  %v275 = vunpack.c.h.b16 %v30
  %v276 = vunpack.c.l.b16 %v31
  %v277 = vpack.c.b16 %v270, %v270
  %v278 = vpack.c.b16 %v271, %v271
  %v279 = vpack.c.b16 %v272, %v272
  %v280 = vpack.c.b16 %v273, %v273
  %v281 = vpack.c.b16 %v274, %v274
  %v282 = vpack.c.b16 %v275, %v275
  %v283 = vpack.c.b16 %v276, %v276
  %v515 = vunpack.c.l.b16 %v32
  %v516 = vunpack.c.h.b16 %v32
  %v517 = vunpack.c.l.b16 %v33
  %v518 = vunpack.c.h.b16 %v33
  %v519 = vunpack.c.l.b16 %v34
  %v520 = vunpack.c.h.b16 %v34
  %v521 = vunpack.c.l.b16 %v35
  %v522 = vunpack.c.h.b16 %v35
  %v523 = vunpack.c.l.b16 %v36
  %v524 = vunpack.c.h.b16 %v36
  %v525 = vunpack.c.l.b16 %v37
  %v526 = vunpack.c.h.b16 %v37
  %v527 = vunpack.c.l.b16 %v38
  %v528 = vunpack.c.h.b16 %v38
  %v529 = vunpack.c.l.b16 %v39
  %v530 = vunpack.c.h.b16 %v39
  %v531 = vunpack.c.l.b16 %v40
  %v532 = vunpack.c.h.b16 %v40
  %v533 = vunpack.c.l.b16 %v41
  %v534 = vunpack.c.h.b16 %v41
  %v535 = vunpack.c.l.b16 %v42
  %v536 = vunpack.c.h.b16 %v42
  %v537 = vunpack.c.l.b16 %v43
  %v538 = vunpack.c.h.b16 %v43
  %v539 = vunpack.c.l.b16 %v44
  %v540 = vunpack.c.h.b16 %v44
  %v541 = vunpack.c.l.b16 %v45
  %v542 = vunpack.c.h.b16 %v45
  %v543 = vunpack.c.l.b16 %v46
  %v544 = vunpack.c.h.b16 %v46
  %v545 = vunpack.c.l.b16 %v47
  %v546 = vunpack.c.h.b16 %v47
  %v547 = vunpack.c.l.b16 %v48
  %v548 = vunpack.c.h.b16 %v48
  %v549 = vunpack.c.l.b16 %v49
  %v550 = vunpack.c.h.b16 %v49
  %v551 = vunpack.c.l.b16 %v50
  %v552 = vunpack.c.h.b16 %v50
  %v553 = vunpack.c.l.b16 %v51
  %v554 = vunpack.c.h.b16 %v51
  %v555 = vunpack.c.l.b16 %v52
  %v556 = vunpack.c.h.b16 %v52
  %v557 = vunpack.c.l.b16 %v53
  %v558 = vunpack.c.h.b16 %v53
  %v559 = vunpack.c.l.b16 %v54
  %v560 = vunpack.c.h.b16 %v54
  %v561 = vunpack.c.l.b16 %v55
  %v562 = vunpack.c.h.b16 %v55
  %v563 = vunpack.c.l.b16 %v56
  %v564 = vunpack.c.h.b16 %v56
  %v565 = vunpack.c.l.b16 %v57
  %v566 = vunpack.c.h.b16 %v57
  %v567 = vunpack.c.l.b16 %v58
  %v568 = vunpack.c.h.b16 %v58
  %v569 = vunpack.c.l.b16 %v59
  %v570 = vunpack.c.h.b16 %v59
  %v571 = vunpack.c.l.b16 %v60
  %v572 = vunpack.c.h.b16 %v60
  %v573 = vunpack.c.l.b16 %v61
  %v574 = vunpack.c.h.b16 %v61
  %v575 = vunpack.c.l.b16 %v62
  %v576 = vunpack.c.h.b16 %v62
  %v577 = vunpack.c.l.b16 %v63
  %v578 = vunpack.c.h.b16 %v63
  %v579 = vunpack.c.l.b16 %v64
  %v580 = vunpack.c.h.b16 %v64
  %v581 = vunpack.c.l.b16 %v65
  %v582 = vunpack.c.h.b16 %v65
  %v583 = vunpack.c.l.b16 %v66
  %v584 = vunpack.c.h.b16 %v66
  %v585 = vunpack.c.l.b16 %v67
  %v586 = vunpack.c.h.b16 %v67
  %v587 = vunpack.c.l.b16 %v68
  %v588 = vunpack.c.h.b16 %v68
  %v589 = vunpack.c.l.b16 %v69
  %v590 = vunpack.c.h.b16 %v69
  %v591 = vunpack.c.l.b16 %v70
  %v592 = vunpack.c.h.b16 %v70
  %v593 = vunpack.c.l.b16 %v71
  %v594 = vunpack.c.h.b16 %v71
  %v595 = vunpack.c.l.b16 %v72
  %v596 = vunpack.c.h.b16 %v72
  %v597 = vunpack.c.l.b16 %v73
  %v598 = vunpack.c.h.b16 %v73
  %v599 = vunpack.c.l.b16 %v74
  %v600 = vunpack.c.h.b16 %v74
  %v601 = vunpack.c.l.b16 %v75
  %v602 = vunpack.c.h.b16 %v75
  %v603 = vunpack.c.l.b16 %v76
  %v604 = vunpack.c.h.b16 %v76
  %v605 = vunpack.c.l.b16 %v77
  %v606 = vunpack.c.h.b16 %v77
  %v607 = vunpack.c.l.b16 %v78
  %v608 = vunpack.c.h.b16 %v78
  %v609 = vunpack.c.l.b16 %v79
  %v610 = vunpack.c.h.b16 %v79
  %v611 = vunpack.c.l.b16 %v80
  %v612 = vunpack.c.h.b16 %v80
  %v613 = vunpack.c.l.b16 %v81
  %v614 = vunpack.c.h.b16 %v81
  %v615 = vunpack.c.l.b16 %v82
  %v616 = vunpack.c.h.b16 %v82
  %v617 = vunpack.c.l.b16 %v83
  %v618 = vunpack.c.h.b16 %v83
  %v619 = vunpack.c.l.b16 %v84
  %v620 = vunpack.c.h.b16 %v84
  %v621 = vunpack.c.l.b16 %v85
  %v622 = vunpack.c.h.b16 %v85
  %v623 = vunpack.c.l.b16 %v86
  %v624 = vunpack.c.h.b16 %v86
  %v625 = vunpack.c.l.b16 %v87
  %v626 = vunpack.c.h.b16 %v87
  %v627 = vunpack.c.l.b16 %v88
  %v628 = vunpack.c.h.b16 %v88
  %v629 = vunpack.c.l.b16 %v89
  %v630 = vunpack.c.h.b16 %v89
  %v631 = vunpack.c.l.b16 %v90
  %v632 = vunpack.c.h.b16 %v90
  %v633 = vunpack.c.l.b16 %v91
  %v634 = vunpack.c.h.b16 %v91
  %v635 = vunpack.c.l.b16 %v92
  %v636 = vunpack.c.h.b16 %v92
  %v637 = vunpack.c.l.b16 %v93
  %v638 = vunpack.c.h.b16 %v93
  %v639 = vunpack.c.l.b16 %v94
  %v640 = vunpack.c.h.b16 %v94
  %v641 = vunpack.c.l.b16 %v95
  %v642 = vunpack.c.h.b16 %v95
  %v643 = vunpack.c.l.b16 %v96
  %v644 = vunpack.c.h.b16 %v96
  %v645 = vunpack.c.l.b16 %v97
  %v646 = vunpack.c.h.b16 %v97
  %v647 = vunpack.c.l.b16 %v98
  %v648 = vunpack.c.h.b16 %v98
  %v649 = vunpack.c.l.b16 %v99
  %v650 = vunpack.c.h.b16 %v99
  %v651 = vunpack.c.l.b16 %v100
  %v652 = vunpack.c.h.b16 %v100
  %v653 = vunpack.c.l.b16 %v101
  %v654 = vunpack.c.h.b16 %v101
  %v655 = vunpack.c.l.b16 %v102
  %v656 = vunpack.c.h.b16 %v102
  %v657 = vunpack.c.l.b16 %v103
  %v658 = vunpack.c.h.b16 %v103
  %v659 = vunpack.c.l.b16 %v104
  %v660 = vunpack.c.h.b16 %v104
  %v661 = vunpack.c.l.b16 %v105
  %v662 = vunpack.c.h.b16 %v105
  %v663 = vunpack.c.l.b16 %v106
  %v664 = vunpack.c.h.b16 %v106
  %v665 = vunpack.c.l.b16 %v107
  %v666 = vunpack.c.h.b16 %v107
  %v667 = vunpack.c.l.b16 %v108
  %v668 = vunpack.c.h.b16 %v108
  %v669 = vunpack.c.l.b16 %v109
  %v670 = vunpack.c.h.b16 %v109
  %v671 = vunpack.c.l.b16 %v110
  %v672 = vunpack.c.h.b16 %v110
  %v673 = vunpack.c.l.b16 %v111
  %v674 = vunpack.c.h.b16 %v111
  %v675 = vunpack.c.l.b16 %v112
  %v676 = vunpack.c.h.b16 %v112
  %v677 = vunpack.c.l.b16 %v113
  %v678 = vunpack.c.h.b16 %v113
  %v679 = vunpack.c.l.b16 %v114
  %v680 = vunpack.c.h.b16 %v114
  %v681 = vunpack.c.l.b16 %v115
  %v682 = vunpack.c.h.b16 %v115
  %v683 = vunpack.c.l.b16 %v116
  %v684 = vunpack.c.h.b16 %v116
  %v685 = vunpack.c.l.b16 %v117
  %v686 = vunpack.c.h.b16 %v117
  %v687 = vunpack.c.l.b16 %v118
  %v688 = vunpack.c.h.b16 %v118
  %v689 = vunpack.c.l.b16 %v119
  %v690 = vunpack.c.h.b16 %v119
  %v691 = vunpack.c.l.b16 %v120
  %v692 = vunpack.c.h.b16 %v120
  %v693 = vunpack.c.l.b16 %v121
  %v694 = vunpack.c.h.b16 %v121
  %v695 = vunpack.c.l.b16 %v122
  %v696 = vunpack.c.h.b16 %v122
  %v697 = vunpack.c.l.b16 %v123
  %v698 = vunpack.c.h.b16 %v123
  %v699 = vunpack.c.l.b16 %v124
  %v700 = vunpack.c.h.b16 %v124
  %v701 = vunpack.c.l.b16 %v125
  %v702 = vunpack.c.h.b16 %v125
  %v703 = vunpack.c.l.b16 %v126
  %v704 = vunpack.c.h.b16 %v126
  %v705 = vunpack.c.l.b16 %v127
  %v706 = vunpack.c.h.b16 %v127
  %v707 = vunpack.c.l.b16 %v128
  %v708 = vunpack.c.h.b16 %v128
  %v709 = vunpack.c.l.b16 %v129
  %v710 = vunpack.c.h.b16 %v129
  %v711 = vunpack.c.l.b16 %v130
  %v712 = vunpack.c.h.b16 %v130
  %v713 = vunpack.c.l.b16 %v131
  %v714 = vunpack.c.h.b16 %v131
  %v715 = vunpack.c.l.b16 %v132
  %v716 = vunpack.c.h.b16 %v132
  %v717 = vunpack.c.l.b16 %v133
  %v718 = vunpack.c.h.b16 %v133
  %v719 = vunpack.c.l.b16 %v134
  %v720 = vunpack.c.h.b16 %v134
  %v721 = vunpack.c.l.b16 %v135
  %v722 = vunpack.c.h.b16 %v135
  %v723 = vunpack.c.l.b16 %v136
  %v724 = vunpack.c.h.b16 %v136
  %v725 = vunpack.c.l.b16 %v137
  %v726 = vunpack.c.h.b16 %v137
  %v727 = vunpack.c.l.b16 %v138
  %v728 = vunpack.c.h.b16 %v138
  %v729 = vunpack.c.l.b16 %v139
  %v730 = vunpack.c.h.b16 %v139
  %v731 = vunpack.c.l.b16 %v140
  %v732 = vunpack.c.h.b16 %v140
  %v733 = vunpack.c.l.b16 %v141
  %v734 = vunpack.c.h.b16 %v141
  %v735 = vunpack.c.l.b16 %v142
  %v736 = vunpack.c.h.b16 %v142
  %v737 = vunpack.c.l.b16 %v143
  %v738 = vunpack.c.h.b16 %v143
  %v739 = vunpack.c.l.b16 %v144
  %v740 = vunpack.c.h.b16 %v144
  %v741 = vunpack.c.l.b16 %v145
  %v742 = vunpack.c.h.b16 %v145
  %v743 = vunpack.c.l.b16 %v146
  %v744 = vunpack.c.h.b16 %v146
  %v745 = vunpack.c.l.b16 %v147
  %v746 = vunpack.c.h.b16 %v147
  %v747 = vunpack.c.l.b16 %v148
  %v748 = vunpack.c.h.b16 %v148
  %v749 = vunpack.c.l.b16 %v149
  %v750 = vunpack.c.h.b16 %v149
  %v751 = vunpack.c.l.b16 %v150
  %v752 = vunpack.c.h.b16 %v150
  %v753 = vunpack.c.l.b16 %v151
  %v754 = vunpack.c.h.b16 %v151
  %v755 = vunpack.c.l.b16 %v152
  %v756 = vunpack.c.h.b16 %v152
  %v757 = vunpack.c.l.b16 %v153
  %v758 = vunpack.c.h.b16 %v153
  %v759 = vunpack.c.l.b16 %v154
  %v760 = vunpack.c.h.b16 %v154
  %v761 = vunpack.c.l.b16 %v155
  %v762 = vunpack.c.h.b16 %v155
  %v763 = vunpack.c.l.b16 %v156
  %v764 = vunpack.c.h.b16 %v156
  %v765 = vunpack.c.l.b16 %v157
  %v766 = vunpack.c.h.b16 %v157
  %v767 = vunpack.c.l.b16 %v158
  %v768 = vunpack.c.h.b16 %v158
  %v769 = vunpack.c.l.b16 %v159
  %v770 = vunpack.c.h.b16 %v159
  %v771 = vunpack.c.l.b16 %v160
  %v772 = vunpack.c.h.b16 %v160
  %v773 = vunpack.c.l.b16 %v161
  %v774 = vunpack.c.h.b16 %v161
  %v775 = vunpack.c.l.b16 %v162
  %v776 = vunpack.c.h.b16 %v162
  %v777 = vunpack.c.l.b16 %v163
  %v778 = vunpack.c.h.b16 %v163
  %v779 = vunpack.c.l.b16 %v164
  %v780 = vunpack.c.h.b16 %v164
  %v781 = vunpack.c.l.b16 %v165
  %v782 = vunpack.c.h.b16 %v165
  %v783 = vunpack.c.l.b16 %v166
  %v784 = vunpack.c.h.b16 %v166
  %v785 = vunpack.c.l.b16 %v167
  %v786 = vunpack.c.h.b16 %v167
  %v787 = vunpack.c.l.b16 %v168
  %v788 = vunpack.c.h.b16 %v168
  %v789 = vunpack.c.l.b16 %v169
  %v790 = vunpack.c.h.b16 %v169
  %v791 = vunpack.c.l.b16 %v170
  %v792 = vunpack.c.h.b16 %v170
  %v793 = vunpack.c.l.b16 %v171
  %v794 = vunpack.c.h.b16 %v171
  %v795 = vunpack.c.l.b16 %v172
  %v796 = vunpack.c.h.b16 %v172
  %v797 = vunpack.c.l.b16 %v173
  %v798 = vunpack.c.h.b16 %v173
  %v799 = vunpack.c.l.b16 %v174
  %v800 = vunpack.c.h.b16 %v174
  %v801 = vunpack.c.l.b16 %v175
  %v802 = vunpack.c.h.b16 %v175
  %v803 = vunpack.c.l.b16 %v176
  %v804 = vunpack.c.h.b16 %v176
  %v805 = vunpack.c.l.b16 %v177
  %v806 = vunpack.c.h.b16 %v177
  %v807 = vunpack.c.l.b16 %v178
  %v808 = vunpack.c.h.b16 %v178
  %v809 = vunpack.c.l.b16 %v179
  %v810 = vunpack.c.h.b16 %v179
  %v811 = vunpack.c.l.b16 %v180
  %v812 = vunpack.c.h.b16 %v180
  %v813 = vunpack.c.l.b16 %v181
  %v814 = vunpack.c.h.b16 %v181
  %v815 = vunpack.c.l.b16 %v182
  %v816 = vunpack.c.h.b16 %v182
  %v817 = vunpack.c.l.b16 %v183
  %v818 = vunpack.c.h.b16 %v183
  %v819 = vunpack.c.l.b16 %v184
  %v820 = vunpack.c.h.b16 %v184
  %v821 = vunpack.c.l.b16 %v185
  %v822 = vunpack.c.h.b16 %v185
  %v823 = vunpack.c.l.b16 %v186
  %v824 = vunpack.c.h.b16 %v186
  %v825 = vunpack.c.l.b16 %v187
  %v826 = vunpack.c.h.b16 %v187
  %v827 = vunpack.c.l.b16 %v188
  %v828 = vunpack.c.h.b16 %v188
  %v829 = vunpack.c.l.b16 %v189
  %v830 = vunpack.c.h.b16 %v189
  %v831 = vunpack.c.l.b16 %v190
  %v832 = vunpack.c.h.b16 %v190
  %v833 = vunpack.c.l.b16 %v191
  %v834 = vunpack.c.h.b16 %v191
  %v835 = vunpack.c.l.b16 %v192
  %v836 = vunpack.c.h.b16 %v192
  %v837 = vunpack.c.l.b16 %v193
  %v838 = vunpack.c.h.b16 %v193
  %v839 = vunpack.c.l.b16 %v194
  %v840 = vunpack.c.h.b16 %v194
  %v841 = vunpack.c.l.b16 %v195
  %v842 = vunpack.c.h.b16 %v195
  %v843 = vunpack.c.l.b16 %v196
  %v844 = vunpack.c.h.b16 %v196
  %v845 = vunpack.c.l.b16 %v197
  %v846 = vunpack.c.h.b16 %v197
  %v847 = vunpack.c.l.b16 %v198
  %v848 = vunpack.c.h.b16 %v198
  %v849 = vunpack.c.l.b16 %v199
  %v850 = vunpack.c.h.b16 %v199
  %v851 = vunpack.c.l.b16 %v200
  %v852 = vunpack.c.h.b16 %v200
  %v853 = vunpack.c.l.b16 %v201
  %v854 = vunpack.c.h.b16 %v201
  %v855 = vunpack.c.l.b16 %v202
  %v856 = vunpack.c.h.b16 %v202
  %v857 = vunpack.c.l.b16 %v203
  %v858 = vunpack.c.h.b16 %v203
  %v859 = vunpack.c.l.b16 %v204
  %v860 = vunpack.c.h.b16 %v204
  %v861 = vunpack.c.l.b16 %v205
  %v862 = vunpack.c.h.b16 %v205
  %v863 = vunpack.c.l.b16 %v206
  %v864 = vunpack.c.h.b16 %v206
  %v865 = vunpack.c.l.b16 %v207
  %v866 = vunpack.c.h.b16 %v207
  %v867 = vunpack.c.l.b16 %v208
  %v868 = vunpack.c.h.b16 %v208
  %v869 = vunpack.c.l.b16 %v209
  %v870 = vunpack.c.h.b16 %v209
  %v871 = vunpack.c.l.b16 %v210
  %v872 = vunpack.c.h.b16 %v210
  %v873 = vunpack.c.l.b16 %v211
  %v874 = vunpack.c.h.b16 %v211
  %v875 = vunpack.c.l.b16 %v212
  %v876 = vunpack.c.h.b16 %v212
  %v877 = vunpack.c.l.b16 %v213
  %v878 = vunpack.c.h.b16 %v213
  %v879 = vunpack.c.l.b16 %v214
  %v880 = vunpack.c.h.b16 %v214
  %v881 = vunpack.c.l.b16 %v215
  %v882 = vunpack.c.h.b16 %v215
  %v883 = vunpack.c.l.b16 %v216
  %v884 = vunpack.c.h.b16 %v216
  %v885 = vunpack.c.l.b16 %v217
  %v886 = vunpack.c.h.b16 %v217
  %v887 = vunpack.c.l.b16 %v218
  %v888 = vunpack.c.h.b16 %v218
  %v889 = vunpack.c.l.b16 %v219
  %v890 = vunpack.c.h.b16 %v219
  %v891 = vunpack.c.l.b16 %v220
  %v892 = vunpack.c.h.b16 %v220
  %v893 = vunpack.c.l.b16 %v221
  %v894 = vunpack.c.h.b16 %v221
  %v895 = vunpack.c.l.b16 %v222
  %v896 = vunpack.c.h.b16 %v222
  %v897 = vunpack.c.l.b16 %v223
  %v898 = vunpack.c.h.b16 %v223
  %v899 = vunpack.c.l.b16 %v224
  %v900 = vunpack.c.h.b16 %v224
  %v901 = vunpack.c.l.b16 %v225
  %v902 = vunpack.c.h.b16 %v225
  %v903 = vunpack.c.l.b16 %v226
  %v904 = vunpack.c.h.b16 %v226
  %v905 = vunpack.c.l.b16 %v227
  %v906 = vunpack.c.h.b16 %v227
  %v907 = vunpack.c.l.b16 %v228
  %v908 = vunpack.c.h.b16 %v228
  %v909 = vunpack.c.l.b16 %v229
  %v910 = vunpack.c.h.b16 %v229
  %v911 = vunpack.c.l.b16 %v230
  %v912 = vunpack.c.h.b16 %v230
  %v913 = vunpack.c.l.b16 %v231
  %v914 = vunpack.c.h.b16 %v231
  %v915 = vunpack.c.l.b16 %v232
  %v916 = vunpack.c.h.b16 %v232
  %v917 = vunpack.c.l.b16 %v233
  %v918 = vunpack.c.h.b16 %v233
  %v919 = vunpack.c.l.b16 %v234
  %v920 = vunpack.c.h.b16 %v234
  %v921 = vunpack.c.l.b16 %v235
  %v922 = vunpack.c.h.b16 %v235
  %v923 = vunpack.c.l.b16 %v236
  %v924 = vunpack.c.h.b16 %v236
  %v925 = vunpack.c.l.b16 %v237
  %v926 = vunpack.c.h.b16 %v237
  %v927 = vunpack.c.l.b16 %v238
  %v928 = vunpack.c.h.b16 %v238
  %v929 = vunpack.c.l.b16 %v239
  %v930 = vunpack.c.h.b16 %v239
  %v931 = vunpack.c.l.b16 %v240
  %v932 = vunpack.c.h.b16 %v240
  %v933 = vunpack.c.l.b16 %v241
  %v934 = vunpack.c.h.b16 %v241
  %v935 = vunpack.c.l.b16 %v242
  %v936 = vunpack.c.h.b16 %v242
  %v937 = vunpack.c.l.b16 %v243
  %v938 = vunpack.c.h.b16 %v243
  %v939 = vunpack.c.l.b16 %v244
  %v940 = vunpack.c.h.b16 %v244
  %v941 = vunpack.c.l.b16 %v245
  %v942 = vunpack.c.h.b16 %v245
  %v943 = vunpack.c.l.b16 %v246
  %v944 = vunpack.c.h.b16 %v246
  %v945 = vunpack.c.l.b16 %v247
  %v946 = vunpack.c.h.b16 %v247
  %v947 = vunpack.c.l.b16 %v248
  %v948 = vunpack.c.h.b16 %v248
  %v949 = vunpack.c.l.b16 %v249
  %v950 = vunpack.c.h.b16 %v249
  %v951 = vunpack.c.l.b16 %v250
  %v952 = vunpack.c.h.b16 %v250
  %v953 = vunpack.c.l.b16 %v251
  %v954 = vunpack.c.h.b16 %v251
  %v955 = vunpack.c.l.b16 %v252
  %v956 = vunpack.c.h.b16 %v252
  %v957 = vunpack.c.l.b16 %v253
  %v958 = vunpack.c.h.b16 %v253
  %v959 = vunpack.c.l.b16 %v254
  %v960 = vunpack.c.h.b16 %v254
  %v961 = vunpack.c.l.b16 %v255
  %v962 = vunpack.c.h.b16 %v255
  %v963 = vpack.c.b16 %v519, %v515
  %v964 = vpack.c.b16 %v520, %v516
  %v965 = vpack.c.b16 %v521, %v517
  %v966 = vpack.c.b16 %v522, %v518
  %v967 = vpack.c.b16 %v527, %v523
  %v968 = vpack.c.b16 %v528, %v524
  %v969 = vpack.c.b16 %v529, %v525
  %v970 = vpack.c.b16 %v530, %v526
  %v971 = vpack.c.b16 %v535, %v531
  %v972 = vpack.c.b16 %v536, %v532
  %v973 = vpack.c.b16 %v537, %v533
  %v974 = vpack.c.b16 %v538, %v534
  %v975 = vpack.c.b16 %v543, %v539
  %v976 = vpack.c.b16 %v544, %v540
  %v977 = vpack.c.b16 %v545, %v541
  %v978 = vpack.c.b16 %v546, %v542
  %v979 = vpack.c.b16 %v551, %v547
  %v980 = vpack.c.b16 %v552, %v548
  %v981 = vpack.c.b16 %v553, %v549
  %v982 = vpack.c.b16 %v554, %v550
  %v983 = vpack.c.b16 %v559, %v555
  %v984 = vpack.c.b16 %v560, %v556
  %v985 = vpack.c.b16 %v561, %v557
  %v986 = vpack.c.b16 %v562, %v558
  %v987 = vpack.c.b16 %v567, %v563
  %v988 = vpack.c.b16 %v568, %v564
  %v989 = vpack.c.b16 %v569, %v565
  %v990 = vpack.c.b16 %v570, %v566
  %v991 = vpack.c.b16 %v575, %v571
  %v992 = vpack.c.b16 %v576, %v572
  %v993 = vpack.c.b16 %v577, %v573
  %v994 = vpack.c.b16 %v578, %v574
  %v995 = vpack.c.b16 %v583, %v579
  %v996 = vpack.c.b16 %v584, %v580
  %v997 = vpack.c.b16 %v585, %v581
  %v998 = vpack.c.b16 %v586, %v582
  %v999 = vpack.c.b16 %v591, %v587
  %v1000 = vpack.c.b16 %v592, %v588
  %v1001 = vpack.c.b16 %v593, %v589
  %v1002 = vpack.c.b16 %v594, %v590
  %v1003 = vpack.c.b16 %v599, %v595
  %v1004 = vpack.c.b16 %v600, %v596
  %v1005 = vpack.c.b16 %v601, %v597
  %v1006 = vpack.c.b16 %v602, %v598
  %v1007 = vpack.c.b16 %v607, %v603
  %v1008 = vpack.c.b16 %v608, %v604
  %v1009 = vpack.c.b16 %v609, %v605
  %v1010 = vpack.c.b16 %v610, %v606
  %v1011 = vpack.c.b16 %v615, %v611
  %v1012 = vpack.c.b16 %v616, %v612
  %v1013 = vpack.c.b16 %v617, %v613
  %v1014 = vpack.c.b16 %v618, %v614
  %v1015 = vpack.c.b16 %v623, %v619
  %v1016 = vpack.c.b16 %v624, %v620
  %v1017 = vpack.c.b16 %v625, %v621
  %v1018 = vpack.c.b16 %v626, %v622
  %v1019 = vpack.c.b16 %v631, %v627
  %v1020 = vpack.c.b16 %v632, %v628
  %v1021 = vpack.c.b16 %v633, %v629
  %v1022 = vpack.c.b16 %v634, %v630
  %v1023 = vpack.c.b16 %v639, %v635
  %v1024 = vpack.c.b16 %v640, %v636
  %v1025 = vpack.c.b16 %v641, %v637
  %v1026 = vpack.c.b16 %v642, %v638
  %v1027 = vpack.c.b16 %v647, %v643
  %v1028 = vpack.c.b16 %v648, %v644
  %v1029 = vpack.c.b16 %v649, %v645
  %v1030 = vpack.c.b16 %v650, %v646
  %v1031 = vpack.c.b16 %v655, %v651
  %v1032 = vpack.c.b16 %v656, %v652
  %v1033 = vpack.c.b16 %v657, %v653
  %v1034 = vpack.c.b16 %v658, %v654
  %v1035 = vpack.c.b16 %v663, %v659
  %v1036 = vpack.c.b16 %v664, %v660
  %v1037 = vpack.c.b16 %v665, %v661
  %v1038 = vpack.c.b16 %v666, %v662
  %v1039 = vpack.c.b16 %v671, %v667
  %v1040 = vpack.c.b16 %v672, %v668
  %v1041 = vpack.c.b16 %v673, %v669
  %v1042 = vpack.c.b16 %v674, %v670
  %v1043 = vpack.c.b16 %v679, %v675
  %v1044 = vpack.c.b16 %v680, %v676
  %v1045 = vpack.c.b16 %v681, %v677
  %v1046 = vpack.c.b16 %v682, %v678
  %v1047 = vpack.c.b16 %v687, %v683
  %v1048 = vpack.c.b16 %v688, %v684
  %v1049 = vpack.c.b16 %v689, %v685
  %v1050 = vpack.c.b16 %v690, %v686
  %v1051 = vpack.c.b16 %v695, %v691
  %v1052 = vpack.c.b16 %v696, %v692
  %v1053 = vpack.c.b16 %v697, %v693
  %v1054 = vpack.c.b16 %v698, %v694
  %v1055 = vpack.c.b16 %v703, %v699
  %v1056 = vpack.c.b16 %v704, %v700
  %v1057 = vpack.c.b16 %v705, %v701
  %v1058 = vpack.c.b16 %v706, %v702
  %v1059 = vpack.c.b16 %v711, %v707
  %v1060 = vpack.c.b16 %v712, %v708
  %v1061 = vpack.c.b16 %v713, %v709
  %v1062 = vpack.c.b16 %v714, %v710
  %v1063 = vpack.c.b16 %v719, %v715
  %v1064 = vpack.c.b16 %v720, %v716
  %v1065 = vpack.c.b16 %v721, %v717
  %v1066 = vpack.c.b16 %v722, %v718
  %v1067 = vpack.c.b16 %v727, %v723
  %v1068 = vpack.c.b16 %v728, %v724
  %v1069 = vpack.c.b16 %v729, %v725
  %v1070 = vpack.c.b16 %v730, %v726
  %v1071 = vpack.c.b16 %v735, %v731
  %v1072 = vpack.c.b16 %v736, %v732
  %v1073 = vpack.c.b16 %v737, %v733
  %v1074 = vpack.c.b16 %v738, %v734
  %v1075 = vpack.c.b16 %v743, %v739
  %v1076 = vpack.c.b16 %v744, %v740
  %v1077 = vpack.c.b16 %v745, %v741
  %v1078 = vpack.c.b16 %v746, %v742
  %v1079 = vpack.c.b16 %v751, %v747
  %v1080 = vpack.c.b16 %v752, %v748
  %v1081 = vpack.c.b16 %v753, %v749
  %v1082 = vpack.c.b16 %v754, %v750
  %v1083 = vpack.c.b16 %v759, %v755
  %v1084 = vpack.c.b16 %v760, %v756
  %v1085 = vpack.c.b16 %v761, %v757
  %v1086 = vpack.c.b16 %v762, %v758
  %v1087 = vpack.c.b16 %v767, %v763
  %v1088 = vpack.c.b16 %v768, %v764
  %v1089 = vpack.c.b16 %v769, %v765
  %v1090 = vpack.c.b16 %v770, %v766
  %v1091 = vpack.c.b16 %v775, %v771
  %v1092 = vpack.c.b16 %v776, %v772
  %v1093 = vpack.c.b16 %v777, %v773
  %v1094 = vpack.c.b16 %v778, %v774
  %v1095 = vpack.c.b16 %v783, %v779
  %v1096 = vpack.c.b16 %v784, %v780
  %v1097 = vpack.c.b16 %v785, %v781
  %v1098 = vpack.c.b16 %v786, %v782
  %v1099 = vpack.c.b16 %v791, %v787
  %v1100 = vpack.c.b16 %v792, %v788
  %v1101 = vpack.c.b16 %v793, %v789
  %v1102 = vpack.c.b16 %v794, %v790
  %v1103 = vpack.c.b16 %v799, %v795
  %v1104 = vpack.c.b16 %v800, %v796
  %v1105 = vpack.c.b16 %v801, %v797
  %v1106 = vpack.c.b16 %v802, %v798
  %v1107 = vpack.c.b16 %v807, %v803
  %v1108 = vpack.c.b16 %v808, %v804
  %v1109 = vpack.c.b16 %v809, %v805
  %v1110 = vpack.c.b16 %v810, %v806
  %v1111 = vpack.c.b16 %v815, %v811
  %v1112 = vpack.c.b16 %v816, %v812
  %v1113 = vpack.c.b16 %v817, %v813
  %v1114 = vpack.c.b16 %v818, %v814
  %v1115 = vpack.c.b16 %v823, %v819
  %v1116 = vpack.c.b16 %v824, %v820
  %v1117 = vpack.c.b16 %v825, %v821
  %v1118 = vpack.c.b16 %v826, %v822
  %v1119 = vpack.c.b16 %v831, %v827
  %v1120 = vpack.c.b16 %v832, %v828
  %v1121 = vpack.c.b16 %v833, %v829
  %v1122 = vpack.c.b16 %v834, %v830
  %v1123 = vpack.c.b16 %v839, %v835
  %v1124 = vpack.c.b16 %v840, %v836
  %v1125 = vpack.c.b16 %v841, %v837
  %v1126 = vpack.c.b16 %v842, %v838
  %v1127 = vpack.c.b16 %v847, %v843
  %v1128 = vpack.c.b16 %v848, %v844
  %v1129 = vpack.c.b16 %v849, %v845
  %v1130 = vpack.c.b16 %v850, %v846
  %v1131 = vpack.c.b16 %v855, %v851
  %v1132 = vpack.c.b16 %v856, %v852
  %v1133 = vpack.c.b16 %v857, %v853
  %v1134 = vpack.c.b16 %v858, %v854
  %v1135 = vpack.c.b16 %v863, %v859
  %v1136 = vpack.c.b16 %v864, %v860
  %v1137 = vpack.c.b16 %v865, %v861
  %v1138 = vpack.c.b16 %v866, %v862
  %v1139 = vpack.c.b16 %v871, %v867
  %v1140 = vpack.c.b16 %v872, %v868
  %v1141 = vpack.c.b16 %v873, %v869
  %v1142 = vpack.c.b16 %v874, %v870
  %v1143 = vpack.c.b16 %v879, %v875
  %v1144 = vpack.c.b16 %v880, %v876
  %v1145 = vpack.c.b16 %v881, %v877
  %v1146 = vpack.c.b16 %v882, %v878
  %v1147 = vpack.c.b16 %v887, %v883
  %v1148 = vpack.c.b16 %v888, %v884
  %v1149 = vpack.c.b16 %v889, %v885
  %v1150 = vpack.c.b16 %v890, %v886
  %v1151 = vpack.c.b16 %v895, %v891
  %v1152 = vpack.c.b16 %v896, %v892
  %v1153 = vpack.c.b16 %v897, %v893
  %v1154 = vpack.c.b16 %v898, %v894
  %v1155 = vpack.c.b16 %v903, %v899
  %v1156 = vpack.c.b16 %v904, %v900
  %v1157 = vpack.c.b16 %v905, %v901
  %v1158 = vpack.c.b16 %v906, %v902
  %v1159 = vpack.c.b16 %v911, %v907
  %v1160 = vpack.c.b16 %v912, %v908
  %v1161 = vpack.c.b16 %v913, %v909
  %v1162 = vpack.c.b16 %v914, %v910
  %v1163 = vpack.c.b16 %v919, %v915
  %v1164 = vpack.c.b16 %v920, %v916
  %v1165 = vpack.c.b16 %v921, %v917
  %v1166 = vpack.c.b16 %v922, %v918
  %v1167 = vpack.c.b16 %v927, %v923
  %v1168 = vpack.c.b16 %v928, %v924
  %v1169 = vpack.c.b16 %v929, %v925
  %v1170 = vpack.c.b16 %v930, %v926
  %v1171 = vpack.c.b16 %v935, %v931
  %v1172 = vpack.c.b16 %v936, %v932
  %v1173 = vpack.c.b16 %v937, %v933
  %v1174 = vpack.c.b16 %v938, %v934
  %v1175 = vpack.c.b16 %v943, %v939
  %v1176 = vpack.c.b16 %v944, %v940
  %v1177 = vpack.c.b16 %v945, %v941
  %v1178 = vpack.c.b16 %v946, %v942
  %v1179 = vpack.c.b16 %v951, %v947
  %v1180 = vpack.c.b16 %v952, %v948
  %v1181 = vpack.c.b16 %v953, %v949
  %v1182 = vpack.c.b16 %v954, %v950
  %v1183 = vpack.c.b16 %v959, %v955
  %v1184 = vpack.c.b16 %v960, %v956
  %v1185 = vpack.c.b16 %v961, %v957
  %v1186 = vpack.c.b16 %v962, %v958
  %1411 = vmatpush.bf16.msra.mxu0 %v991
  %1412 = vmatpush.bf16.msra.mxu0 %v987
  %1413 = vmatpush.bf16.msra.mxu0 %v983
  %1414 = vmatpush.bf16.msra.mxu0 %v979
  %1415 = vmatpush.bf16.msra.mxu0 %v975
  %1416 = vmatpush.bf16.msra.mxu0 %v971
  %1417 = vmatpush.bf16.msra.mxu0 %v967
  %1418 = vmatpush.bf16.msra.mxu0 %v963
  %1419 = vmatmul.bf16.gmra.mxu0 %v277
  %v1420 = vpop.f32.mrf.mxu0
  %v1421 = vadd.f32 %v258, %v1420
  %v1422 = vpop.f32.mrf.mxu0
  %1423 = vdwg.mxu0
  %1424 = vmatpush.bf16.msra.mxu0 %v1023
  %1425 = vmatpush.bf16.msra.mxu0 %v1019
  %1426 = vmatpush.bf16.msra.mxu0 %v1015
  %1427 = vmatpush.bf16.msra.mxu0 %v1011
  %1428 = vmatpush.bf16.msra.mxu0 %v1007
  %1429 = vmatpush.bf16.msra.mxu0 %v1003
  %1430 = vmatpush.bf16.msra.mxu0 %v999
  %1431 = vmatpush.bf16.msra.mxu0 %v995
  %1432 = vmatmul.bf16.gmra.mxu0 %v278
  %v1433 = vpop.f32.mrf.mxu0
  %v1434 = vadd.f32 %v1421, %v1433
  %v1435 = vpop.f32.mrf.mxu0
  %1436 = vdwg.mxu0
  %1437 = vmatpush.bf16.msra.mxu0 %v1055
  %1438 = vmatpush.bf16.msra.mxu0 %v1051
  %1439 = vmatpush.bf16.msra.mxu0 %v1047
  %1440 = vmatpush.bf16.msra.mxu0 %v1043
  %1441 = vmatpush.bf16.msra.mxu0 %v1039
  %1442 = vmatpush.bf16.msra.mxu0 %v1035
  %1443 = vmatpush.bf16.msra.mxu0 %v1031
  %1444 = vmatpush.bf16.msra.mxu0 %v1027
  %1445 = vmatmul.bf16.gmra.mxu0 %v279
  %v1446 = vpop.f32.mrf.mxu0
  %v1447 = vadd.f32 %v1434, %v1446
  %v1448 = vpop.f32.mrf.mxu0
  %1449 = vdwg.mxu0
  %1450 = vmatpush.bf16.msra.mxu0 %v1087
  %1451 = vmatpush.bf16.msra.mxu0 %v1083
  %1452 = vmatpush.bf16.msra.mxu0 %v1079
  %1453 = vmatpush.bf16.msra.mxu0 %v1075
  %1454 = vmatpush.bf16.msra.mxu0 %v1071
  %1455 = vmatpush.bf16.msra.mxu0 %v1067
  %1456 = vmatpush.bf16.msra.mxu0 %v1063
  %1457 = vmatpush.bf16.msra.mxu0 %v1059
  %1458 = vmatmul.bf16.gmra.mxu0 %v280
  %v1459 = vpop.f32.mrf.mxu0
  %v1460 = vadd.f32 %v1447, %v1459
  %v1461 = vpop.f32.mrf.mxu0
  %1462 = vdwg.mxu0
  %1463 = vmatpush.bf16.msra.mxu0 %v1119
  %1464 = vmatpush.bf16.msra.mxu0 %v1115
  %1465 = vmatpush.bf16.msra.mxu0 %v1111
  %1466 = vmatpush.bf16.msra.mxu0 %v1107
  %1467 = vmatpush.bf16.msra.mxu0 %v1103
  %1468 = vmatpush.bf16.msra.mxu0 %v1099
  %1469 = vmatpush.bf16.msra.mxu0 %v1095
  %1470 = vmatpush.bf16.msra.mxu0 %v1091
  %1471 = vmatmul.bf16.gmra.mxu0 %v281
  %v1472 = vpop.f32.mrf.mxu0
  %v1473 = vadd.f32 %v1460, %v1472
  %v1474 = vpop.f32.mrf.mxu0
  %1475 = vdwg.mxu0
  %1476 = vmatpush.bf16.msra.mxu0 %v1151
  %1477 = vmatpush.bf16.msra.mxu0 %v1147
  %1478 = vmatpush.bf16.msra.mxu0 %v1143
  %1479 = vmatpush.bf16.msra.mxu0 %v1139
  %1480 = vmatpush.bf16.msra.mxu0 %v1135
  %1481 = vmatpush.bf16.msra.mxu0 %v1131
  %1482 = vmatpush.bf16.msra.mxu0 %v1127
  %1483 = vmatpush.bf16.msra.mxu0 %v1123
  %1484 = vmatmul.bf16.gmra.mxu0 %v282
  %v1485 = vpop.f32.mrf.mxu0
  %v1486 = vadd.f32 %v1473, %v1485
  %v1487 = vpop.f32.mrf.mxu0
  %1488 = vdwg.mxu0
  %1489 = vmatpush.bf16.msra.mxu0 %v1183
  %1490 = vmatpush.bf16.msra.mxu0 %v1179
  %1491 = vmatpush.bf16.msra.mxu0 %v1175
  %1492 = vmatpush.bf16.msra.mxu0 %v1171
  %1493 = vmatpush.bf16.msra.mxu0 %v1167
  %1494 = vmatpush.bf16.msra.mxu0 %v1163
  %1495 = vmatpush.bf16.msra.mxu0 %v1159
  %1496 = vmatpush.bf16.msra.mxu0 %v1155
  %1497 = vmatmul.bf16.gmra.mxu0 %v283
  %v1498 = vpop.f32.mrf.mxu0
  %v1499 = vadd.f32 %v1486, %v1498
  %v1500 = vpop.f32.mrf.mxu0
  %1501 = vdwg.mxu0
  %1502 = vmatpush.bf16.msra.mxu0 %v992
  %1503 = vmatpush.bf16.msra.mxu0 %v988
  %1504 = vmatpush.bf16.msra.mxu0 %v984
  %1505 = vmatpush.bf16.msra.mxu0 %v980
  %1506 = vmatpush.bf16.msra.mxu0 %v976
  %1507 = vmatpush.bf16.msra.mxu0 %v972
  %1508 = vmatpush.bf16.msra.mxu0 %v968
  %1509 = vmatpush.bf16.msra.mxu0 %v964
  %1510 = vmatmul.bf16.gmra.mxu0 %v277
  %v1511 = vpop.f32.mrf.mxu0
  %v1512 = vadd.f32 %v259, %v1511
  %v1513 = vpop.f32.mrf.mxu0
  %1514 = vdwg.mxu0
  %1515 = vmatpush.bf16.msra.mxu0 %v1024
  %1516 = vmatpush.bf16.msra.mxu0 %v1020
  %1517 = vmatpush.bf16.msra.mxu0 %v1016
  %1518 = vmatpush.bf16.msra.mxu0 %v1012
  %1519 = vmatpush.bf16.msra.mxu0 %v1008
  %1520 = vmatpush.bf16.msra.mxu0 %v1004
  %1521 = vmatpush.bf16.msra.mxu0 %v1000
  %1522 = vmatpush.bf16.msra.mxu0 %v996
  %1523 = vmatmul.bf16.gmra.mxu0 %v278
  %v1524 = vpop.f32.mrf.mxu0
  %v1525 = vadd.f32 %v1512, %v1524
  %v1526 = vpop.f32.mrf.mxu0
  %1527 = vdwg.mxu0
  %1528 = vmatpush.bf16.msra.mxu0 %v1056
  %1529 = vmatpush.bf16.msra.mxu0 %v1052
  %1530 = vmatpush.bf16.msra.mxu0 %v1048
  %1531 = vmatpush.bf16.msra.mxu0 %v1044
  %1532 = vmatpush.bf16.msra.mxu0 %v1040
  %1533 = vmatpush.bf16.msra.mxu0 %v1036
  %1534 = vmatpush.bf16.msra.mxu0 %v1032
  %1535 = vmatpush.bf16.msra.mxu0 %v1028
  %1536 = vmatmul.bf16.gmra.mxu0 %v279
  %v1537 = vpop.f32.mrf.mxu0
  %v1538 = vadd.f32 %v1525, %v1537
  %v1539 = vpop.f32.mrf.mxu0
  %1540 = vdwg.mxu0
  %1541 = vmatpush.bf16.msra.mxu0 %v1088
  %1542 = vmatpush.bf16.msra.mxu0 %v1084
  %1543 = vmatpush.bf16.msra.mxu0 %v1080
  %1544 = vmatpush.bf16.msra.mxu0 %v1076
  %1545 = vmatpush.bf16.msra.mxu0 %v1072
  %1546 = vmatpush.bf16.msra.mxu0 %v1068
  %1547 = vmatpush.bf16.msra.mxu0 %v1064
  %1548 = vmatpush.bf16.msra.mxu0 %v1060
  %1549 = vmatmul.bf16.gmra.mxu0 %v280
  %v1550 = vpop.f32.mrf.mxu0
  %v1551 = vadd.f32 %v1538, %v1550
  %v1552 = vpop.f32.mrf.mxu0
  %1553 = vdwg.mxu0
  %1554 = vmatpush.bf16.msra.mxu0 %v1120
  %1555 = vmatpush.bf16.msra.mxu0 %v1116
  %1556 = vmatpush.bf16.msra.mxu0 %v1112
  %1557 = vmatpush.bf16.msra.mxu0 %v1108
  %1558 = vmatpush.bf16.msra.mxu0 %v1104
  %1559 = vmatpush.bf16.msra.mxu0 %v1100
  %1560 = vmatpush.bf16.msra.mxu0 %v1096
  %1561 = vmatpush.bf16.msra.mxu0 %v1092
  %1562 = vmatmul.bf16.gmra.mxu0 %v281
  %v1563 = vpop.f32.mrf.mxu0
  %v1564 = vadd.f32 %v1551, %v1563
  %v1565 = vpop.f32.mrf.mxu0
  %1566 = vdwg.mxu0
  %1567 = vmatpush.bf16.msra.mxu0 %v1152
  %1568 = vmatpush.bf16.msra.mxu0 %v1148
  %1569 = vmatpush.bf16.msra.mxu0 %v1144
  %1570 = vmatpush.bf16.msra.mxu0 %v1140
  %1571 = vmatpush.bf16.msra.mxu0 %v1136
  %1572 = vmatpush.bf16.msra.mxu0 %v1132
  %1573 = vmatpush.bf16.msra.mxu0 %v1128
  %1574 = vmatpush.bf16.msra.mxu0 %v1124
  %1575 = vmatmul.bf16.gmra.mxu0 %v282
  %v1576 = vpop.f32.mrf.mxu0
  %v1577 = vadd.f32 %v1564, %v1576
  %v1578 = vpop.f32.mrf.mxu0
  %1579 = vdwg.mxu0
  %1580 = vmatpush.bf16.msra.mxu0 %v1184
  %1581 = vmatpush.bf16.msra.mxu0 %v1180
  %1582 = vmatpush.bf16.msra.mxu0 %v1176
  %1583 = vmatpush.bf16.msra.mxu0 %v1172
  %1584 = vmatpush.bf16.msra.mxu0 %v1168
  %1585 = vmatpush.bf16.msra.mxu0 %v1164
  %1586 = vmatpush.bf16.msra.mxu0 %v1160
  %1587 = vmatpush.bf16.msra.mxu0 %v1156
  %1588 = vmatmul.bf16.gmra.mxu0 %v283
  %v1589 = vpop.f32.mrf.mxu0
  %v1590 = vadd.f32 %v1577, %v1589
  %v1591 = vpop.f32.mrf.mxu0
  %1592 = vdwg.mxu0
  %1593 = vmatpush.bf16.msra.mxu0 %v993
  %1594 = vmatpush.bf16.msra.mxu0 %v989
  %1595 = vmatpush.bf16.msra.mxu0 %v985
  %1596 = vmatpush.bf16.msra.mxu0 %v981
  %1597 = vmatpush.bf16.msra.mxu0 %v977
  %1598 = vmatpush.bf16.msra.mxu0 %v973
  %1599 = vmatpush.bf16.msra.mxu0 %v969
  %1600 = vmatpush.bf16.msra.mxu0 %v965
  %1601 = vmatmul.bf16.gmra.mxu0 %v277
  %v1602 = vpop.f32.mrf.mxu0
  %v1603 = vadd.f32 %v260, %v1602
  %v1604 = vpop.f32.mrf.mxu0
  %1605 = vdwg.mxu0
  %1606 = vmatpush.bf16.msra.mxu0 %v1025
  %1607 = vmatpush.bf16.msra.mxu0 %v1021
  %1608 = vmatpush.bf16.msra.mxu0 %v1017
  %1609 = vmatpush.bf16.msra.mxu0 %v1013
  %1610 = vmatpush.bf16.msra.mxu0 %v1009
  %1611 = vmatpush.bf16.msra.mxu0 %v1005
  %1612 = vmatpush.bf16.msra.mxu0 %v1001
  %1613 = vmatpush.bf16.msra.mxu0 %v997
  %1614 = vmatmul.bf16.gmra.mxu0 %v278
  %v1615 = vpop.f32.mrf.mxu0
  %v1616 = vadd.f32 %v1603, %v1615
  %v1617 = vpop.f32.mrf.mxu0
  %1618 = vdwg.mxu0
  %1619 = vmatpush.bf16.msra.mxu0 %v1057
  %1620 = vmatpush.bf16.msra.mxu0 %v1053
  %1621 = vmatpush.bf16.msra.mxu0 %v1049
  %1622 = vmatpush.bf16.msra.mxu0 %v1045
  %1623 = vmatpush.bf16.msra.mxu0 %v1041
  %1624 = vmatpush.bf16.msra.mxu0 %v1037
  %1625 = vmatpush.bf16.msra.mxu0 %v1033
  %1626 = vmatpush.bf16.msra.mxu0 %v1029
  %1627 = vmatmul.bf16.gmra.mxu0 %v279
  %v1628 = vpop.f32.mrf.mxu0
  %v1629 = vadd.f32 %v1616, %v1628
  %v1630 = vpop.f32.mrf.mxu0
  %1631 = vdwg.mxu0
  %1632 = vmatpush.bf16.msra.mxu0 %v1089
  %1633 = vmatpush.bf16.msra.mxu0 %v1085
  %1634 = vmatpush.bf16.msra.mxu0 %v1081
  %1635 = vmatpush.bf16.msra.mxu0 %v1077
  %1636 = vmatpush.bf16.msra.mxu0 %v1073
  %1637 = vmatpush.bf16.msra.mxu0 %v1069
  %1638 = vmatpush.bf16.msra.mxu0 %v1065
  %1639 = vmatpush.bf16.msra.mxu0 %v1061
  %1640 = vmatmul.bf16.gmra.mxu0 %v280
  %v1641 = vpop.f32.mrf.mxu0
  %v1642 = vadd.f32 %v1629, %v1641
  %v1643 = vpop.f32.mrf.mxu0
  %1644 = vdwg.mxu0
  %1645 = vmatpush.bf16.msra.mxu0 %v1121
  %1646 = vmatpush.bf16.msra.mxu0 %v1117
  %1647 = vmatpush.bf16.msra.mxu0 %v1113
  %1648 = vmatpush.bf16.msra.mxu0 %v1109
  %1649 = vmatpush.bf16.msra.mxu0 %v1105
  %1650 = vmatpush.bf16.msra.mxu0 %v1101
  %1651 = vmatpush.bf16.msra.mxu0 %v1097
  %1652 = vmatpush.bf16.msra.mxu0 %v1093
  %1653 = vmatmul.bf16.gmra.mxu0 %v281
  %v1654 = vpop.f32.mrf.mxu0
  %v1655 = vadd.f32 %v1642, %v1654
  %v1656 = vpop.f32.mrf.mxu0
  %1657 = vdwg.mxu0
  %1658 = vmatpush.bf16.msra.mxu0 %v1153
  %1659 = vmatpush.bf16.msra.mxu0 %v1149
  %1660 = vmatpush.bf16.msra.mxu0 %v1145
  %1661 = vmatpush.bf16.msra.mxu0 %v1141
  %1662 = vmatpush.bf16.msra.mxu0 %v1137
  %1663 = vmatpush.bf16.msra.mxu0 %v1133
  %1664 = vmatpush.bf16.msra.mxu0 %v1129
  %1665 = vmatpush.bf16.msra.mxu0 %v1125
  %1666 = vmatmul.bf16.gmra.mxu0 %v282
  %v1667 = vpop.f32.mrf.mxu0
  %v1668 = vadd.f32 %v1655, %v1667
  %v1669 = vpop.f32.mrf.mxu0
  %1670 = vdwg.mxu0
  %1671 = vmatpush.bf16.msra.mxu0 %v1185
  %1672 = vmatpush.bf16.msra.mxu0 %v1181
  %1673 = vmatpush.bf16.msra.mxu0 %v1177
  %1674 = vmatpush.bf16.msra.mxu0 %v1173
  %1675 = vmatpush.bf16.msra.mxu0 %v1169
  %1676 = vmatpush.bf16.msra.mxu0 %v1165
  %1677 = vmatpush.bf16.msra.mxu0 %v1161
  %1678 = vmatpush.bf16.msra.mxu0 %v1157
  %1679 = vmatmul.bf16.gmra.mxu0 %v283
  %v1680 = vpop.f32.mrf.mxu0
  %v1681 = vadd.f32 %v1668, %v1680
  %v1682 = vpop.f32.mrf.mxu0
  %1683 = vdwg.mxu0
  %1684 = vmatpush.bf16.msra.mxu0 %v994
  %1685 = vmatpush.bf16.msra.mxu0 %v990
  %1686 = vmatpush.bf16.msra.mxu0 %v986
  %1687 = vmatpush.bf16.msra.mxu0 %v982
  %1688 = vmatpush.bf16.msra.mxu0 %v978
  %1689 = vmatpush.bf16.msra.mxu0 %v974
  %1690 = vmatpush.bf16.msra.mxu0 %v970
  %1691 = vmatpush.bf16.msra.mxu0 %v966
  %1692 = vmatmul.bf16.gmra.mxu0 %v277
  %v1693 = vpop.f32.mrf.mxu0
  %v1694 = vadd.f32 %v261, %v1693
  %v1695 = vpop.f32.mrf.mxu0
  %1696 = vdwg.mxu0
  %1697 = vmatpush.bf16.msra.mxu0 %v1026
  %1698 = vmatpush.bf16.msra.mxu0 %v1022
  %1699 = vmatpush.bf16.msra.mxu0 %v1018
  %1700 = vmatpush.bf16.msra.mxu0 %v1014
  %1701 = vmatpush.bf16.msra.mxu0 %v1010
  %1702 = vmatpush.bf16.msra.mxu0 %v1006
  %1703 = vmatpush.bf16.msra.mxu0 %v1002
  %1704 = vmatpush.bf16.msra.mxu0 %v998
  %1705 = vmatmul.bf16.gmra.mxu0 %v278
  %v1706 = vpop.f32.mrf.mxu0
  %v1707 = vadd.f32 %v1694, %v1706
  %v1708 = vpop.f32.mrf.mxu0
  %1709 = vdwg.mxu0
  %1710 = vmatpush.bf16.msra.mxu0 %v1058
  %1711 = vmatpush.bf16.msra.mxu0 %v1054
  %1712 = vmatpush.bf16.msra.mxu0 %v1050
  %1713 = vmatpush.bf16.msra.mxu0 %v1046
  %1714 = vmatpush.bf16.msra.mxu0 %v1042
  %1715 = vmatpush.bf16.msra.mxu0 %v1038
  %1716 = vmatpush.bf16.msra.mxu0 %v1034
  %1717 = vmatpush.bf16.msra.mxu0 %v1030
  %1718 = vmatmul.bf16.gmra.mxu0 %v279
  %v1719 = vpop.f32.mrf.mxu0
  %v1720 = vadd.f32 %v1707, %v1719
  %v1721 = vpop.f32.mrf.mxu0
  %1722 = vdwg.mxu0
  %1723 = vmatpush.bf16.msra.mxu0 %v1090
  %1724 = vmatpush.bf16.msra.mxu0 %v1086
  %1725 = vmatpush.bf16.msra.mxu0 %v1082
  %1726 = vmatpush.bf16.msra.mxu0 %v1078
  %1727 = vmatpush.bf16.msra.mxu0 %v1074
  %1728 = vmatpush.bf16.msra.mxu0 %v1070
  %1729 = vmatpush.bf16.msra.mxu0 %v1066
  %1730 = vmatpush.bf16.msra.mxu0 %v1062
  %1731 = vmatmul.bf16.gmra.mxu0 %v280
  %v1732 = vpop.f32.mrf.mxu0
  %v1733 = vadd.f32 %v1720, %v1732
  %v1734 = vpop.f32.mrf.mxu0
  %1735 = vdwg.mxu0
  %1736 = vmatpush.bf16.msra.mxu0 %v1122
  %1737 = vmatpush.bf16.msra.mxu0 %v1118
  %1738 = vmatpush.bf16.msra.mxu0 %v1114
  %1739 = vmatpush.bf16.msra.mxu0 %v1110
  %1740 = vmatpush.bf16.msra.mxu0 %v1106
  %1741 = vmatpush.bf16.msra.mxu0 %v1102
  %1742 = vmatpush.bf16.msra.mxu0 %v1098
  %1743 = vmatpush.bf16.msra.mxu0 %v1094
  %1744 = vmatmul.bf16.gmra.mxu0 %v281
  %v1745 = vpop.f32.mrf.mxu0
  %v1746 = vadd.f32 %v1733, %v1745
  %v1747 = vpop.f32.mrf.mxu0
  %1748 = vdwg.mxu0
  %1749 = vmatpush.bf16.msra.mxu0 %v1154
  %1750 = vmatpush.bf16.msra.mxu0 %v1150
  %1751 = vmatpush.bf16.msra.mxu0 %v1146
  %1752 = vmatpush.bf16.msra.mxu0 %v1142
  %1753 = vmatpush.bf16.msra.mxu0 %v1138
  %1754 = vmatpush.bf16.msra.mxu0 %v1134
  %1755 = vmatpush.bf16.msra.mxu0 %v1130
  %1756 = vmatpush.bf16.msra.mxu0 %v1126
  %1757 = vmatmul.bf16.gmra.mxu0 %v282
  %v1758 = vpop.f32.mrf.mxu0
  %v1759 = vadd.f32 %v1746, %v1758
  %v1760 = vpop.f32.mrf.mxu0
  %1761 = vdwg.mxu0
  %1762 = vmatpush.bf16.msra.mxu0 %v1186
  %1763 = vmatpush.bf16.msra.mxu0 %v1182
  %1764 = vmatpush.bf16.msra.mxu0 %v1178
  %1765 = vmatpush.bf16.msra.mxu0 %v1174
  %1766 = vmatpush.bf16.msra.mxu0 %v1170
  %1767 = vmatpush.bf16.msra.mxu0 %v1166
  %1768 = vmatpush.bf16.msra.mxu0 %v1162
  %1769 = vmatpush.bf16.msra.mxu0 %v1158
  %1770 = vmatmul.bf16.gmra.mxu0 %v283
  %v1771 = vpop.f32.mrf.mxu0
  %v1772 = vadd.f32 %v1759, %v1771
  %v1773 = vpop.f32.mrf.mxu0
  %1774 = vdwg.mxu0
  %vm1775 = vcmp.gt.f32.partialorder %v1499, 0.0
  %vm1776 = vcmp.gt.f32.partialorder %v1590, 0.0
  %vm1777 = vcmp.gt.f32.partialorder %v1681, 0.0
  %vm1778 = vcmp.gt.f32.partialorder %v1772, 0.0
  %v1779 = vmul.f32 %v1499, 0.2
  %v1780 = vmul.f32 %v1590, 0.2
  %v1781 = vmul.f32 %v1681, 0.2
  %v1782 = vmul.f32 %v1772, 0.2
  %v1783 = vsel %vm1775, %v1499, %v1779
  %v1784 = vsel %vm1776, %v1590, %v1780
  %v1785 = vsel %vm1777, %v1681, %v1781
  %v1786 = vsel %vm1778, %v1772, %v1782
  %v1787 = vpack.c.bf16 %v1783, %v1783
  %v1788 = vpack.c.bf16 %v1784, %v1784
  %v1789 = vpack.c.bf16 %v1785, %v1785
  %v1790 = vpack.c.bf16 %v1786, %v1786
  %v1791 = vld [vmem:[%s3] sm:$0xff]
  %v1792 = vld [vmem:[%s3 + $0x8] sm:$0xff]
  %v1793 = vld [vmem:[%s3 + $0x10] sm:$0xff]
  %v1794 = vld [vmem:[%s3 + $0x18] sm:$0xff]
  %v1795 = vld [vmem:[%s3 + $0x20] sm:$0xff]
  %v1796 = vld [vmem:[%s3 + $0x28] sm:$0xff]
  %v1797 = vld [vmem:[%s3 + $0x30] sm:$0xff]
  %v1798 = vld [vmem:[%s3 + $0x38] sm:$0xff]
  %v1799 = vld [vmem:[%s3 + $0x40] sm:$0xff]
  %v1800 = vld [vmem:[%s3 + $0x48] sm:$0xff]
  %v1801 = vld [vmem:[%s3 + $0x50] sm:$0xff]
  %v1802 = vld [vmem:[%s3 + $0x58] sm:$0xff]
  %v1803 = vld [vmem:[%s3 + $0x60] sm:$0xff]
  %v1804 = vld [vmem:[%s3 + $0x68] sm:$0xff]
  %v1805 = vld [vmem:[%s3 + $0x70] sm:$0xff]
  %v1806 = vld [vmem:[%s3 + $0x78] sm:$0xff]
  %v1807 = vld [vmem:[%s3 + $0x80] sm:$0xff]
  %v1808 = vld [vmem:[%s3 + $0x88] sm:$0xff]
  %v1809 = vld [vmem:[%s3 + $0x90] sm:$0xff]
  %v1810 = vld [vmem:[%s3 + $0x98] sm:$0xff]
  %v1811 = vld [vmem:[%s3 + $0xa0] sm:$0xff]
  %v1812 = vld [vmem:[%s3 + $0xa8] sm:$0xff]
  %v1813 = vld [vmem:[%s3 + $0xb0] sm:$0xff]
  %v1814 = vld [vmem:[%s3 + $0xb8] sm:$0xff]
  %v1815 = vld [vmem:[%s3 + $0xc0] sm:$0xff]
  %v1816 = vld [vmem:[%s3 + $0xc8] sm:$0xff]
  %v1817 = vld [vmem:[%s3 + $0xd0] sm:$0xff]
  %v1818 = vld [vmem:[%s3 + $0xd8] sm:$0xff]
  %v1819 = vld [vmem:[%s3 + $0xe0] sm:$0xff]
  %v1820 = vld [vmem:[%s3 + $0xe8] sm:$0xff]
  %v1821 = vld [vmem:[%s3 + $0xf0] sm:$0xff]
  %v1822 = vld [vmem:[%s3 + $0xf8] sm:$0xff]
  %v1823 = vld [vmem:[%s3 + $0x100] sm:$0xff]
  %v1824 = vld [vmem:[%s3 + $0x108] sm:$0xff]
  %v1825 = vld [vmem:[%s3 + $0x110] sm:$0xff]
  %v1826 = vld [vmem:[%s3 + $0x118] sm:$0xff]
  %v1827 = vld [vmem:[%s3 + $0x120] sm:$0xff]
  %v1828 = vld [vmem:[%s3 + $0x128] sm:$0xff]
  %v1829 = vld [vmem:[%s3 + $0x130] sm:$0xff]
  %v1830 = vld [vmem:[%s3 + $0x138] sm:$0xff]
  %v1831 = vld [vmem:[%s3 + $0x140] sm:$0xff]
  %v1832 = vld [vmem:[%s3 + $0x148] sm:$0xff]
  %v1833 = vld [vmem:[%s3 + $0x150] sm:$0xff]
  %v1834 = vld [vmem:[%s3 + $0x158] sm:$0xff]
  %v1835 = vld [vmem:[%s3 + $0x160] sm:$0xff]
  %v1836 = vld [vmem:[%s3 + $0x168] sm:$0xff]
  %v1837 = vld [vmem:[%s3 + $0x170] sm:$0xff]
  %v1838 = vld [vmem:[%s3 + $0x178] sm:$0xff]
  %v1839 = vld [vmem:[%s3 + $0x180] sm:$0xff]
  %v1840 = vld [vmem:[%s3 + $0x188] sm:$0xff]
  %v1841 = vld [vmem:[%s3 + $0x190] sm:$0xff]
  %v1842 = vld [vmem:[%s3 + $0x198] sm:$0xff]
  %v1843 = vld [vmem:[%s3 + $0x1a0] sm:$0xff]
  %v1844 = vld [vmem:[%s3 + $0x1a8] sm:$0xff]
  %v1845 = vld [vmem:[%s3 + $0x1b0] sm:$0xff]
  %v1846 = vld [vmem:[%s3 + $0x1b8] sm:$0xff]
  %v1847 = vld [vmem:[%s3 + $0x1c0] sm:$0xff]
  %v1848 = vld [vmem:[%s3 + $0x1c8] sm:$0xff]
  %v1849 = vld [vmem:[%s3 + $0x1d0] sm:$0xff]
  %v1850 = vld [vmem:[%s3 + $0x1d8] sm:$0xff]
  %v1851 = vld [vmem:[%s3 + $0x1e0] sm:$0xff]
  %v1852 = vld [vmem:[%s3 + $0x1e8] sm:$0xff]
  %v1853 = vld [vmem:[%s3 + $0x1f0] sm:$0xff]
  %v1854 = vld [vmem:[%s3 + $0x1f8] sm:$0xff]
  %v1855 = vld [vmem:[%s4] sm:$0x3]
  %v1857 = vperm.slane %v1855, 0
  %v1858 = vperm.slane %v1855, 1
  %v1925 = vunpack.c.l.b16 %v1791
  %v1926 = vunpack.c.h.b16 %v1791
  %v1927 = vunpack.c.l.b16 %v1792
  %v1928 = vunpack.c.h.b16 %v1792
  %v1929 = vunpack.c.l.b16 %v1793
  %v1930 = vunpack.c.h.b16 %v1793
  %v1931 = vunpack.c.l.b16 %v1794
  %v1932 = vunpack.c.h.b16 %v1794
  %v1933 = vunpack.c.l.b16 %v1795
  %v1934 = vunpack.c.h.b16 %v1795
  %v1935 = vunpack.c.l.b16 %v1796
  %v1936 = vunpack.c.h.b16 %v1796
  %v1937 = vunpack.c.l.b16 %v1797
  %v1938 = vunpack.c.h.b16 %v1797
  %v1939 = vunpack.c.l.b16 %v1798
  %v1940 = vunpack.c.h.b16 %v1798
  %v1941 = vunpack.c.l.b16 %v1799
  %v1942 = vunpack.c.h.b16 %v1799
  %v1943 = vunpack.c.l.b16 %v1800
  %v1944 = vunpack.c.h.b16 %v1800
  %v1945 = vunpack.c.l.b16 %v1801
  %v1946 = vunpack.c.h.b16 %v1801
  %v1947 = vunpack.c.l.b16 %v1802
  %v1948 = vunpack.c.h.b16 %v1802
  %v1949 = vunpack.c.l.b16 %v1803
  %v1950 = vunpack.c.h.b16 %v1803
  %v1951 = vunpack.c.l.b16 %v1804
  %v1952 = vunpack.c.h.b16 %v1804
  %v1953 = vunpack.c.l.b16 %v1805
  %v1954 = vunpack.c.h.b16 %v1805
  %v1955 = vunpack.c.l.b16 %v1806
  %v1956 = vunpack.c.h.b16 %v1806
  %v1957 = vunpack.c.l.b16 %v1807
  %v1958 = vunpack.c.h.b16 %v1807
  %v1959 = vunpack.c.l.b16 %v1808
  %v1960 = vunpack.c.h.b16 %v1808
  %v1961 = vunpack.c.l.b16 %v1809
  %v1962 = vunpack.c.h.b16 %v1809
  %v1963 = vunpack.c.l.b16 %v1810
  %v1964 = vunpack.c.h.b16 %v1810
  %v1965 = vunpack.c.l.b16 %v1811
  %v1966 = vunpack.c.h.b16 %v1811
  %v1967 = vunpack.c.l.b16 %v1812
  %v1968 = vunpack.c.h.b16 %v1812
  %v1969 = vunpack.c.l.b16 %v1813
  %v1970 = vunpack.c.h.b16 %v1813
  %v1971 = vunpack.c.l.b16 %v1814
  %v1972 = vunpack.c.h.b16 %v1814
  %v1973 = vunpack.c.l.b16 %v1815
  %v1974 = vunpack.c.h.b16 %v1815
  %v1975 = vunpack.c.l.b16 %v1816
  %v1976 = vunpack.c.h.b16 %v1816
  %v1977 = vunpack.c.l.b16 %v1817
  %v1978 = vunpack.c.h.b16 %v1817
  %v1979 = vunpack.c.l.b16 %v1818
  %v1980 = vunpack.c.h.b16 %v1818
  %v1981 = vunpack.c.l.b16 %v1819
  %v1982 = vunpack.c.h.b16 %v1819
  %v1983 = vunpack.c.l.b16 %v1820
  %v1984 = vunpack.c.h.b16 %v1820
  %v1985 = vunpack.c.l.b16 %v1821
  %v1986 = vunpack.c.h.b16 %v1821
  %v1987 = vunpack.c.l.b16 %v1822
  %v1988 = vunpack.c.h.b16 %v1822
  %v1989 = vunpack.c.l.b16 %v1823
  %v1990 = vunpack.c.h.b16 %v1823
  %v1991 = vunpack.c.l.b16 %v1824
  %v1992 = vunpack.c.h.b16 %v1824
  %v1993 = vunpack.c.l.b16 %v1825
  %v1994 = vunpack.c.h.b16 %v1825
  %v1995 = vunpack.c.l.b16 %v1826
  %v1996 = vunpack.c.h.b16 %v1826
  %v1997 = vunpack.c.l.b16 %v1827
  %v1998 = vunpack.c.h.b16 %v1827
  %v1999 = vunpack.c.l.b16 %v1828
  %v2000 = vunpack.c.h.b16 %v1828
  %v2001 = vunpack.c.l.b16 %v1829
  %v2002 = vunpack.c.h.b16 %v1829
  %v2003 = vunpack.c.l.b16 %v1830
  %v2004 = vunpack.c.h.b16 %v1830
  %v2005 = vunpack.c.l.b16 %v1831
  %v2006 = vunpack.c.h.b16 %v1831
  %v2007 = vunpack.c.l.b16 %v1832
  %v2008 = vunpack.c.h.b16 %v1832
  %v2009 = vunpack.c.l.b16 %v1833
  %v2010 = vunpack.c.h.b16 %v1833
  %v2011 = vunpack.c.l.b16 %v1834
  %v2012 = vunpack.c.h.b16 %v1834
  %v2013 = vunpack.c.l.b16 %v1835
  %v2014 = vunpack.c.h.b16 %v1835
  %v2015 = vunpack.c.l.b16 %v1836
  %v2016 = vunpack.c.h.b16 %v1836
  %v2017 = vunpack.c.l.b16 %v1837
  %v2018 = vunpack.c.h.b16 %v1837
  %v2019 = vunpack.c.l.b16 %v1838
  %v2020 = vunpack.c.h.b16 %v1838
  %v2021 = vunpack.c.l.b16 %v1839
  %v2022 = vunpack.c.h.b16 %v1839
  %v2023 = vunpack.c.l.b16 %v1840
  %v2024 = vunpack.c.h.b16 %v1840
  %v2025 = vunpack.c.l.b16 %v1841
  %v2026 = vunpack.c.h.b16 %v1841
  %v2027 = vunpack.c.l.b16 %v1842
  %v2028 = vunpack.c.h.b16 %v1842
  %v2029 = vunpack.c.l.b16 %v1843
  %v2030 = vunpack.c.h.b16 %v1843
  %v2031 = vunpack.c.l.b16 %v1844
  %v2032 = vunpack.c.h.b16 %v1844
  %v2033 = vunpack.c.l.b16 %v1845
  %v2034 = vunpack.c.h.b16 %v1845
  %v2035 = vunpack.c.l.b16 %v1846
  %v2036 = vunpack.c.h.b16 %v1846
  %v2037 = vunpack.c.l.b16 %v1847
  %v2038 = vunpack.c.h.b16 %v1847
  %v2039 = vunpack.c.l.b16 %v1848
  %v2040 = vunpack.c.h.b16 %v1848
  %v2041 = vunpack.c.l.b16 %v1849
  %v2042 = vunpack.c.h.b16 %v1849
  %v2043 = vunpack.c.l.b16 %v1850
  %v2044 = vunpack.c.h.b16 %v1850
  %v2045 = vunpack.c.l.b16 %v1851
  %v2046 = vunpack.c.h.b16 %v1851
  %v2047 = vunpack.c.l.b16 %v1852
  %v2048 = vunpack.c.h.b16 %v1852
  %v2049 = vunpack.c.l.b16 %v1853
  %v2050 = vunpack.c.h.b16 %v1853
  %v2051 = vunpack.c.l.b16 %v1854
  %v2052 = vunpack.c.h.b16 %v1854
  %v2053 = vpack.c.b16 %v1927, %v1925
  %v2054 = vpack.c.b16 %v1928, %v1926
  %v2055 = vpack.c.b16 %v1931, %v1929
  %v2056 = vpack.c.b16 %v1932, %v1930
  %v2057 = vpack.c.b16 %v1935, %v1933
  %v2058 = vpack.c.b16 %v1936, %v1934
  %v2059 = vpack.c.b16 %v1939, %v1937
  %v2060 = vpack.c.b16 %v1940, %v1938
  %v2061 = vpack.c.b16 %v1943, %v1941
  %v2062 = vpack.c.b16 %v1944, %v1942
  %v2063 = vpack.c.b16 %v1947, %v1945
  %v2064 = vpack.c.b16 %v1948, %v1946
  %v2065 = vpack.c.b16 %v1951, %v1949
  %v2066 = vpack.c.b16 %v1952, %v1950
  %v2067 = vpack.c.b16 %v1955, %v1953
  %v2068 = vpack.c.b16 %v1956, %v1954
  %v2069 = vpack.c.b16 %v1959, %v1957
  %v2070 = vpack.c.b16 %v1960, %v1958
  %v2071 = vpack.c.b16 %v1963, %v1961
  %v2072 = vpack.c.b16 %v1964, %v1962
  %v2073 = vpack.c.b16 %v1967, %v1965
  %v2074 = vpack.c.b16 %v1968, %v1966
  %v2075 = vpack.c.b16 %v1971, %v1969
  %v2076 = vpack.c.b16 %v1972, %v1970
  %v2077 = vpack.c.b16 %v1975, %v1973
  %v2078 = vpack.c.b16 %v1976, %v1974
  %v2079 = vpack.c.b16 %v1979, %v1977
  %v2080 = vpack.c.b16 %v1980, %v1978
  %v2081 = vpack.c.b16 %v1983, %v1981
  %v2082 = vpack.c.b16 %v1984, %v1982
  %v2083 = vpack.c.b16 %v1987, %v1985
  %v2084 = vpack.c.b16 %v1988, %v1986
  %v2085 = vpack.c.b16 %v1991, %v1989
  %v2086 = vpack.c.b16 %v1992, %v1990
  %v2087 = vpack.c.b16 %v1995, %v1993
  %v2088 = vpack.c.b16 %v1996, %v1994
  %v2089 = vpack.c.b16 %v1999, %v1997
  %v2090 = vpack.c.b16 %v2000, %v1998
  %v2091 = vpack.c.b16 %v2003, %v2001
  %v2092 = vpack.c.b16 %v2004, %v2002
  %v2093 = vpack.c.b16 %v2007, %v2005
  %v2094 = vpack.c.b16 %v2008, %v2006
  %v2095 = vpack.c.b16 %v2011, %v2009
  %v2096 = vpack.c.b16 %v2012, %v2010
  %v2097 = vpack.c.b16 %v2015, %v2013
  %v2098 = vpack.c.b16 %v2016, %v2014
  %v2099 = vpack.c.b16 %v2019, %v2017
  %v2100 = vpack.c.b16 %v2020, %v2018
  %v2101 = vpack.c.b16 %v2023, %v2021
  %v2102 = vpack.c.b16 %v2024, %v2022
  %v2103 = vpack.c.b16 %v2027, %v2025
  %v2104 = vpack.c.b16 %v2028, %v2026
  %v2105 = vpack.c.b16 %v2031, %v2029
  %v2106 = vpack.c.b16 %v2032, %v2030
  %v2107 = vpack.c.b16 %v2035, %v2033
  %v2108 = vpack.c.b16 %v2036, %v2034
  %v2109 = vpack.c.b16 %v2039, %v2037
  %v2110 = vpack.c.b16 %v2040, %v2038
  %v2111 = vpack.c.b16 %v2043, %v2041
  %v2112 = vpack.c.b16 %v2044, %v2042
  %v2113 = vpack.c.b16 %v2047, %v2045
  %v2114 = vpack.c.b16 %v2048, %v2046
  %v2115 = vpack.c.b16 %v2051, %v2049
  %v2116 = vpack.c.b16 %v2052, %v2050
  %2181 = vmatpush.bf16.msra.mxu0 %v2067
  %2182 = vmatpush.bf16.msra.mxu0 %v2065
  %2183 = vmatpush.bf16.msra.mxu0 %v2063
  %2184 = vmatpush.bf16.msra.mxu0 %v2061
  %2185 = vmatpush.bf16.msra.mxu0 %v2059
  %2186 = vmatpush.bf16.msra.mxu0 %v2057
  %2187 = vmatpush.bf16.msra.mxu0 %v2055
  %2188 = vmatpush.bf16.msra.mxu0 %v2053
  %2189 = vmatmul.bf16.gmra.mxu0 %v1787
  %v2190 = vpop.f32.mrf.mxu0
  %v2191 = vadd.f32 %v1857, %v2190
  %v2192 = vpop.f32.mrf.mxu0
  %2193 = vdwg.mxu0
  %2194 = vmatpush.bf16.msra.mxu0 %v2083
  %2195 = vmatpush.bf16.msra.mxu0 %v2081
  %2196 = vmatpush.bf16.msra.mxu0 %v2079
  %2197 = vmatpush.bf16.msra.mxu0 %v2077
  %2198 = vmatpush.bf16.msra.mxu0 %v2075
  %2199 = vmatpush.bf16.msra.mxu0 %v2073
  %2200 = vmatpush.bf16.msra.mxu0 %v2071
  %2201 = vmatpush.bf16.msra.mxu0 %v2069
  %2202 = vmatmul.bf16.gmra.mxu0 %v1788
  %v2203 = vpop.f32.mrf.mxu0
  %v2204 = vadd.f32 %v2191, %v2203
  %v2205 = vpop.f32.mrf.mxu0
  %2206 = vdwg.mxu0
  %2207 = vmatpush.bf16.msra.mxu0 %v2099
  %2208 = vmatpush.bf16.msra.mxu0 %v2097
  %2209 = vmatpush.bf16.msra.mxu0 %v2095
  %2210 = vmatpush.bf16.msra.mxu0 %v2093
  %2211 = vmatpush.bf16.msra.mxu0 %v2091
  %2212 = vmatpush.bf16.msra.mxu0 %v2089
  %2213 = vmatpush.bf16.msra.mxu0 %v2087
  %2214 = vmatpush.bf16.msra.mxu0 %v2085
  %2215 = vmatmul.bf16.gmra.mxu0 %v1789
  %v2216 = vpop.f32.mrf.mxu0
  %v2217 = vadd.f32 %v2204, %v2216
  %v2218 = vpop.f32.mrf.mxu0
  %2219 = vdwg.mxu0
  %2220 = vmatpush.bf16.msra.mxu0 %v2115
  %2221 = vmatpush.bf16.msra.mxu0 %v2113
  %2222 = vmatpush.bf16.msra.mxu0 %v2111
  %2223 = vmatpush.bf16.msra.mxu0 %v2109
  %2224 = vmatpush.bf16.msra.mxu0 %v2107
  %2225 = vmatpush.bf16.msra.mxu0 %v2105
  %2226 = vmatpush.bf16.msra.mxu0 %v2103
  %2227 = vmatpush.bf16.msra.mxu0 %v2101
  %2228 = vmatmul.bf16.gmra.mxu0 %v1790
  %v2229 = vpop.f32.mrf.mxu0
  %v2230 = vadd.f32 %v2217, %v2229
  %v2231 = vpop.f32.mrf.mxu0
  %2232 = vdwg.mxu0
  %2233 = vmatpush.bf16.msra.mxu0 %v2068
  %2234 = vmatpush.bf16.msra.mxu0 %v2066
  %2235 = vmatpush.bf16.msra.mxu0 %v2064
  %2236 = vmatpush.bf16.msra.mxu0 %v2062
  %2237 = vmatpush.bf16.msra.mxu0 %v2060
  %2238 = vmatpush.bf16.msra.mxu0 %v2058
  %2239 = vmatpush.bf16.msra.mxu0 %v2056
  %2240 = vmatpush.bf16.msra.mxu0 %v2054
  %2241 = vmatmul.bf16.gmra.mxu0 %v1787
  %v2242 = vpop.f32.mrf.mxu0
  %v2243 = vadd.f32 %v1858, %v2242
  %v2244 = vpop.f32.mrf.mxu0
  %2245 = vdwg.mxu0
  %2246 = vmatpush.bf16.msra.mxu0 %v2084
  %2247 = vmatpush.bf16.msra.mxu0 %v2082
  %2248 = vmatpush.bf16.msra.mxu0 %v2080
  %2249 = vmatpush.bf16.msra.mxu0 %v2078
  %2250 = vmatpush.bf16.msra.mxu0 %v2076
  %2251 = vmatpush.bf16.msra.mxu0 %v2074
  %2252 = vmatpush.bf16.msra.mxu0 %v2072
  %2253 = vmatpush.bf16.msra.mxu0 %v2070
  %2254 = vmatmul.bf16.gmra.mxu0 %v1788
  %v2255 = vpop.f32.mrf.mxu0
  %v2256 = vadd.f32 %v2243, %v2255
  %v2257 = vpop.f32.mrf.mxu0
  %2258 = vdwg.mxu0
  %2259 = vmatpush.bf16.msra.mxu0 %v2100
  %2260 = vmatpush.bf16.msra.mxu0 %v2098
  %2261 = vmatpush.bf16.msra.mxu0 %v2096
  %2262 = vmatpush.bf16.msra.mxu0 %v2094
  %2263 = vmatpush.bf16.msra.mxu0 %v2092
  %2264 = vmatpush.bf16.msra.mxu0 %v2090
  %2265 = vmatpush.bf16.msra.mxu0 %v2088
  %2266 = vmatpush.bf16.msra.mxu0 %v2086
  %2267 = vmatmul.bf16.gmra.mxu0 %v1789
  %v2268 = vpop.f32.mrf.mxu0
  %v2269 = vadd.f32 %v2256, %v2268
  %v2270 = vpop.f32.mrf.mxu0
  %2271 = vdwg.mxu0
  %2272 = vmatpush.bf16.msra.mxu0 %v2116
  %2273 = vmatpush.bf16.msra.mxu0 %v2114
  %2274 = vmatpush.bf16.msra.mxu0 %v2112
  %2275 = vmatpush.bf16.msra.mxu0 %v2110
  %2276 = vmatpush.bf16.msra.mxu0 %v2108
  %2277 = vmatpush.bf16.msra.mxu0 %v2106
  %2278 = vmatpush.bf16.msra.mxu0 %v2104
  %2279 = vmatpush.bf16.msra.mxu0 %v2102
  %2280 = vmatmul.bf16.gmra.mxu0 %v1790
  %v2281 = vpop.f32.mrf.mxu0
  %v2282 = vadd.f32 %v2269, %v2281
  %v2283 = vpop.f32.mrf.mxu0
  %2284 = vdwg.mxu0
  %vm2285 = vcmp.gt.f32.partialorder %v2230, 0.0
  %vm2286 = vcmp.gt.f32.partialorder %v2282, 0.0
  %v2287 = vmul.f32 %v2230, 0.2
  %v2288 = vmul.f32 %v2282, 0.2
  %v2289 = vsel %vm2285, %v2230, %v2287
  %v2290 = vsel %vm2286, %v2282, %v2288
  %v2291 = vld [vmem:[%s5] sm:$0x3]
  %v2293 = vperm.slane %v2291, 0
  %v2294 = vperm.slane %v2291, 1
  %v2297 = vmul.f32 %v2289, %v2293
  %v2298 = vmul.f32 %v2290, %v2294
  %v2299 = vadd.f32 %v2297, %v2298
  %2300 = vadd.xlane.f32.xlu0 %v2299
  %v2301 = vpop.xlane.xlu0 %2300
  %v2302 = vld [vmem:[#allocation2] sm:$0x1]
  %v2304 = vperm.slane %v2302, 0
  %v2306 = vadd.f32 %v2301, %v2304
  %vm2307 = vcmask 7168
  %2308 = vst.msk [vmem:[%s7] sm:$0xff] %vm2307, %v2306
  // Predicated region
  $region30: #{discriminator_forward.1} parent=0 // pred_check
    _
  $region31: #{discriminator_forward.1} parent=0 // pred_check_branch
    %2310 = sbr.rel (0) target = $region33
  $region32: #{discriminator_forward.1} parent=0 // pred_region
    _
  $region33: #{discriminator_forward.1} parent=0 // pred_fallthru
    _
  // Predicated region
  $region34: #{discriminator_forward.1} parent=0 // pred_check
    _
  $region35: #{discriminator_forward.1} parent=0 // pred_check_branch
    %2312 = sbr.rel (0) target = $region37
  $region36: #{discriminator_forward.1} parent=0 // pred_region
    _
  $region37: #{discriminator_forward.1} parent=0 // pred_fallthru
    _

</llo_original>
